<compile_context>
chip_gen: v6e
topology: v6e:2x2x1
jax: 0.10.0
libtpu: 0.0.40
codegen_flags: <defaults>
</compile_context>

<pallas_src>
import jax
import jax.numpy as jnp
from jax.experimental import pallas as pl
from jax.experimental.pallas import tpu as pltpu

# ----------------------- static model / problem sizes -----------------------
NUM_USERS = 8
NUM_FOODS = 8
EMB_DIM = 32              # embedding_dim == SignedGCN hidden_channels
NUM_HEADS = 4
NUM_LAYER = 3
FEATURE_THRESHOLD = 0.3
USER_IN_DIM = 16
FOOD_IN_DIM = 24
NUM_EDGES = 16
NUM_POS_EDGES = 16
NUM_NEG_EDGES = 16
TOTAL_NODES = NUM_USERS + NUM_FOODS
HALF = EMB_DIM // 2

assert NUM_POS_EDGES == NUM_EDGES and NUM_NEG_EDGES == NUM_EDGES, \
    "index-slab packing assumes equal edge counts"

# ------------------------ packed-slab row layout (f32, 32 lanes) -------------
FEAT_COLS = USER_IN_DIM + FOOD_IN_DIM + 2 + 6       # 48: [u feats|f feats|1u|1f|pad]
R_LIN = 0                                           # 48 rows: [Wu;Wf;b_u;b_f;pad]
R_CONV = 48                                         # 3 * 96 rows: per-layer [Wa;Wb;Wc]
R_WSQ = R_CONV + 3 * (3 * EMB_DIM)                  # 336: squared metric weights (H,32)
R_BIAS = 344                                        # layer bias at R_BIAS + 8*l
R_SGX0 = 368                                        # 16 rows: SignedGCN x0
R_DISCW = 384                                       # 64 rows: discriminator W (cols 0..2)
R_DISCB = 448                                       # 1 row: discriminator bias (cols 0..2)
R_FUSEW = 456                                       # 1 row: softmaxed fusion weights
PARAM_ROWS = 464


# ------------------------------ the fused kernel -----------------------------
def sgsl_kernel(idx_ref, feat_ref, param_ref, lg_e0_ref, out_ref):
    f32 = jnp.float32
    bf16 = jnp.bfloat16
    N = TOTAL_NODES
    E = NUM_EDGES
    E2 = 2 * E

    idx = idx_ref[...]                                          # (2E, 8) int32

    def onehot(col, n, dtype):
        # column `col` of the index slab -> (2E, n) one-hot
        cols = jax.lax.broadcasted_iota(jnp.int32, (E2, n), 1)
        return jnp.where(cols == idx[:, col:col + 1], 1.0, 0.0).astype(dtype)

    # --- 1. both per-node-type Linear(-1,32)+bias+ReLU as ONE matmul ---------
    h_uf = jnp.maximum(
        jnp.dot(feat_ref[...], param_ref[R_LIN:R_LIN + FEAT_COLS, :],
                preferred_element_type=f32), 0.0)               # (16,32) [users;foods]

    # --- 2. GraphGenerator: multi-head weighted cosine similarity ------------
    # one gather matmul for BOTH sides: rows 0..E-1 = h_user[e_u], E.. = h_food[e_f]
    lr = jnp.dot(onehot(0, N, f32), h_uf, preferred_element_type=f32)   # (2E,32)
    left, right = lr[:E], lr[E:]
    prods = jnp.concatenate([left * right, left * left, right * right], axis=0)
    w_sq = param_ref[R_WSQ:R_WSQ + NUM_HEADS, :]                # metric_w ** 2
    sums = jax.lax.dot_general(prods, w_sq, (((1,), (1,)), ((), ())),
                               preferred_element_type=f32)      # (3E, H)
    num, nl, nr = sums[:E], sums[E:2 * E], sums[2 * E:]
    cos = num * jax.lax.rsqrt(jnp.maximum(nl * nr, 1e-16))      # EUP rsqrt
    sim = jnp.sum(cos, axis=1, keepdims=True) * (1.0 / NUM_HEADS)
    mask_feature = jnp.where(sim < FEATURE_THRESHOLD, 0.0, sim)  # (E,1)

    # --- 3. SignedGCN: one fused mean-agg matrix + fused per-layer matmuls ---
    oh_src = onehot(1, N, bf16)                 # (2E,16) [pos srcs ; neg srcs]
    oh_dst = onehot(2, 2 * N, bf16)             # (2E,32) [pos dsts ; neg dsts+16]
    cnt_mat = jax.lax.dot_general(oh_dst, oh_src, (((0,), (0,)), ((), ())),
                                  preferred_element_type=f32)   # (32,16), exact counts
    cnt = jnp.sum(cnt_mat, axis=1, keepdims=True)               # in-degrees
    m_all = cnt_mat / jnp.maximum(cnt, 1.0)                     # [M_pos ; M_neg]

    z = param_ref[R_SGX0:R_SGX0 + N, :]                         # (16,32)
    for l in range(NUM_LAYER):                                  # static unroll (3)
        g = jnp.dot(m_all, z, preferred_element_type=f32)       # (32,32): [G_pos;G_neg]
        h = jnp.concatenate([g[:N], g[N:], z], axis=1)          # (16,96)
        z = jnp.maximum(
            jnp.dot(h, param_ref[R_CONV + 96 * l:R_CONV + 96 * (l + 1), :],
                    preferred_element_type=f32)
            + param_ref[R_BIAS + 8 * l:R_BIAS + 8 * l + 1, :], 0.0)

    # --- 4. discriminator + argmax -> semantic mask in {-1,0,1} --------------
    # edge_index consumed exactly as in the reference module (indices as-is).
    oh_raw = onehot(3, N, f32)                  # (2E,16): rows 0..E-1=edge[0], E..=edge[1]
    zz = jnp.dot(oh_raw, z, preferred_element_type=f32)         # (2E,32)
    zcat = jnp.concatenate([zz[:E], zz[E:]], axis=1)            # (E,64)
    logits = (jnp.dot(zcat, param_ref[R_DISCW:R_DISCW + 2 * EMB_DIM, :],
                      preferred_element_type=f32)
              + param_ref[R_DISCB:R_DISCB + 1, :])[:, :3]       # (E,3)
    mx = jnp.max(logits, axis=1, keepdims=True)
    cls_iota = jax.lax.broadcasted_iota(jnp.int32, logits.shape, 1).astype(f32)
    cls = jnp.min(jnp.where(logits >= mx, cls_iota, 3.0), axis=1, keepdims=True)
    mask_semantic = cls - 1.0                                   # (E,1)

    # --- 5. GraphChannelAttLayer fusion -> 0/1 edge weights ------------------
    fw = param_ref[R_FUSEW:R_FUSEW + 1, :]      # softmaxed weights in cols 0..2
    nf = mask_feature * pl.reciprocal(
        jnp.maximum(jnp.sum(jnp.abs(mask_feature), axis=0, keepdims=True), 1e-12),
        approx=True)
    nsm = mask_semantic * pl.reciprocal(
        jnp.maximum(jnp.sum(jnp.abs(mask_semantic), axis=0, keepdims=True), 1e-12),
        approx=True)
    fused = fw[0:1, 0:1] * (1.0 / E) + fw[0:1, 1:2] * nf + fw[0:1, 2:3] * nsm
    # TODO(synk): edge_index[:, edge_mask] boolean compaction has no static-shape
    # equivalent; kept as 0/1 edge weights (identical LightGCN propagation).
    edge_w = jnp.where(fused > 0.5, 1.0, 0.0)                   # (E,1)

    # --- 6. LightGCN on the masked graph (D^-1/2 A D^-1/2 propagation) -------
    oh_e0 = oh_raw[:E].astype(bf16)                             # rows = edge[0]
    oh_e1w = (edge_w * oh_raw[E:]).astype(bf16)                 # cols = edge[1] (as-is)
    adj = jax.lax.dot_general(oh_e0, oh_e1w, (((0,), (0,)), ((), ())),
                              preferred_element_type=f32)       # (16,16) weighted adj
    deg = jnp.sum(adj, axis=1, keepdims=True)
    dis = jnp.where(deg > 0.0,
                    jax.lax.rsqrt(jnp.where(deg > 0.0, deg, 1.0)), 0.0)
    emb = lg_e0_ref[...]
    acc = emb
    for _ in range(NUM_LAYER):                                  # static unroll (3)
        emb = dis * jnp.dot(adj, dis * emb, preferred_element_type=f32)
        acc = acc + emb
    out_ref[...] = acc * (1.0 / (NUM_LAYER + 1))


# ------------------------------- host-side packing ---------------------------
def _pack_indices(edge_index, pos_edge_index, neg_edge_index):
    i32 = jnp.int32
    eu = edge_index[0].astype(i32)
    ef = edge_index[1].astype(i32)
    ps, pd = pos_edge_index[0].astype(i32), pos_edge_index[1].astype(i32)
    ns, nd = neg_edge_index[0].astype(i32), neg_edge_index[1].astype(i32)
    cols = [
        jnp.concatenate([eu, ef + NUM_USERS]),       # 0: generator gather into [h_user;h_food]
        jnp.concatenate([ps, ns]),                   # 1: signed mean-agg sources
        jnp.concatenate([pd, nd + TOTAL_NODES]),     # 2: signed mean-agg dests (pos/neg block)
        jnp.concatenate([eu, ef]),                   # 3: raw edge indices (disc gather, adjacency)
    ]
    pad = [jnp.zeros_like(cols[0])] * 4
    return jnp.stack(cols + pad, axis=1)             # (2E, 8) int32


def _pack_features(user_x, food_x):
    fs = jnp.zeros((TOTAL_NODES, FEAT_COLS), jnp.float32)
    fs = fs.at[:NUM_USERS, 0:USER_IN_DIM].set(user_x)
    fs = fs.at[NUM_USERS:, USER_IN_DIM:USER_IN_DIM + FOOD_IN_DIM].set(food_x)
    fs = fs.at[:NUM_USERS, USER_IN_DIM + FOOD_IN_DIM].set(1.0)      # user bias col
    fs = fs.at[NUM_USERS:, USER_IN_DIM + FOOD_IN_DIM + 1].set(1.0)  # food bias col
    return fs


def _pack_params(p):
    """Pack every small parameter into one (PARAM_ROWS, 32) f32 slab."""
    f32 = jnp.float32
    zhh = jnp.zeros((HALF, HALF), f32)
    zfh = jnp.zeros((EMB_DIM, HALF), f32)

    def bdiag(a, b):   # [[a, 0], [0, b]]
        return jnp.concatenate(
            [jnp.concatenate([a, zhh], 1), jnp.concatenate([zhh, b], 1)], 0)

    def adiag(a, b):   # [[0, a], [b, 0]]
        return jnp.concatenate(
            [jnp.concatenate([zhh, a], 1), jnp.concatenate([b, zhh], 1)], 0)

    # fused SignedConv blocks: z' = relu([G_pos|G_neg|z] @ [Wa;Wb;Wc] + bias)
    conv_blocks, biases = [], []
    wa = jnp.concatenate([p['conv1_pos_l_w'], zfh], 1)     # first_aggr=True layer
    wb = jnp.concatenate([zfh, p['conv1_neg_l_w']], 1)
    wc = jnp.concatenate([p['conv1_pos_r_w'], p['conv1_neg_r_w']], 1)
    conv_blocks.append(jnp.concatenate([wa, wb, wc], 0))   # (96,32)
    biases.append(jnp.concatenate([p['conv1_pos_r_b'], p['conv1_neg_r_b']])[None, :])
    for l in range(NUM_LAYER - 1):                         # first_aggr=False layers
        wpl, wnl = p[f'convL{l}_pos_l_w'], p[f'convL{l}_neg_l_w']
        wa = bdiag(wpl[:HALF], wnl[:HALF])
        wb = adiag(wnl[HALF:], wpl[HALF:])
        wc = bdiag(p[f'convL{l}_pos_r_w'], p[f'convL{l}_neg_r_w'])
        conv_blocks.append(jnp.concatenate([wa, wb, wc], 0))
        biases.append(jnp.concatenate(
            [p[f'convL{l}_pos_r_b'], p[f'convL{l}_neg_r_b']])[None, :])

    lin_block = jnp.concatenate([
        p['lin_user_w'], p['lin_food_w'],
        p['lin_user_b'][None, :], p['lin_food_b'][None, :],
        jnp.zeros((FEAT_COLS - USER_IN_DIM - FOOD_IN_DIM - 2, EMB_DIM), f32)], 0)

    slab = jnp.zeros((PARAM_ROWS, EMB_DIM), f32)
    slab = slab.at[R_LIN:R_LIN + FEAT_COLS].set(lin_block)
    slab = slab.at[R_CONV:R_CONV + 3 * 96].set(jnp.concatenate(conv_blocks, 0))
    slab = slab.at[R_WSQ:R_WSQ + NUM_HEADS].set(p['metric_w'] * p['metric_w'])
    for l in range(NUM_LAYER):
        slab = slab.at[R_BIAS + 8 * l:R_BIAS + 8 * l + 1].set(biases[l])
    slab = slab.at[R_SGX0:R_SGX0 + TOTAL_NODES].set(
        jnp.concatenate([p['sg_users_emb'], p['sg_items_emb']], 0))
    slab = slab.at[R_DISCW:R_DISCW + 2 * EMB_DIM, 0:3].set(p['disc_w'])
    slab = slab.at[R_DISCB, 0:3].set(p['disc_b'])
    slab = slab.at[R_FUSEW, 0:3].set(jax.nn.softmax(p['fusion_w']))
    return slab


# ------------------------------- host wrapper --------------------------------
def sgsl_forward(p, user_x, food_x, edge_index, pos_edge_index, neg_edge_index):
    idx_slab = _pack_indices(edge_index, pos_edge_index, neg_edge_index)
    feat_slab = _pack_features(user_x, food_x)
    param_slab = _pack_params(p)
    lg_e0 = jnp.concatenate([p['lg_users_emb'], p['lg_items_emb']], axis=0)

    vmem = pl.BlockSpec(memory_space=pltpu.MemorySpace.VMEM)
    emb_final = pl.pallas_call(
        sgsl_kernel,
        out_shape=jax.ShapeDtypeStruct((TOTAL_NODES, EMB_DIM), jnp.float32),
        in_specs=[vmem, vmem, vmem, vmem],
        out_specs=vmem,
        # lg_e0 is a fresh concat inside jit -> safe to clobber with the output.
        input_output_aliases={3: 0},
    )(idx_slab, feat_slab, param_slab, lg_e0)

    return (emb_final[:NUM_USERS], p['lg_users_emb'],
            emb_final[NUM_USERS:], p['lg_items_emb'])


# ------------------------------ parameter init -------------------------------
def init_params(key):
    p = {}

    def nrm(k, shape, std):
        return std * jax.random.normal(k, shape, jnp.float32)

    keys = iter(jax.random.split(key, 32))
    # per-node-type lazy Linear(-1, EMB_DIM) with bias
    p['lin_user_w'] = nrm(next(keys), (USER_IN_DIM, EMB_DIM), 0.2)
    p['lin_user_b'] = nrm(next(keys), (EMB_DIM,), 0.1)
    p['lin_food_w'] = nrm(next(keys), (FOOD_IN_DIM, EMB_DIM), 0.2)
    p['lin_food_b'] = nrm(next(keys), (EMB_DIM,), 0.1)
    # GraphGenerator: num_heads MetricCalculator weights of shape (1, EMB_DIM)
    p['metric_w'] = nrm(next(keys), (NUM_HEADS, EMB_DIM), 0.5)
    # SignedGCN embeddings (std=0.1 as in module)
    p['sg_users_emb'] = nrm(next(keys), (NUM_USERS, EMB_DIM), 0.1)
    p['sg_items_emb'] = nrm(next(keys), (NUM_FOODS, EMB_DIM), 0.1)
    # conv1 (first_aggr=True): lin_*_l (no bias), lin_*_r (bias), in=EMB_DIM
    p['conv1_pos_l_w'] = nrm(next(keys), (EMB_DIM, HALF), 0.2)
    p['conv1_pos_r_w'] = nrm(next(keys), (EMB_DIM, HALF), 0.2)
    p['conv1_pos_r_b'] = nrm(next(keys), (HALF,), 0.1)
    p['conv1_neg_l_w'] = nrm(next(keys), (EMB_DIM, HALF), 0.2)
    p['conv1_neg_r_w'] = nrm(next(keys), (EMB_DIM, HALF), 0.2)
    p['conv1_neg_r_b'] = nrm(next(keys), (HALF,), 0.1)
    # later convs (first_aggr=False): lin_*_l (2*HALF -> HALF), lin_*_r (HALF -> HALF)
    for l in range(NUM_LAYER - 1):
        p[f'convL{l}_pos_l_w'] = nrm(next(keys), (2 * HALF, HALF), 0.2)
        p[f'convL{l}_pos_r_w'] = nrm(next(keys), (HALF, HALF), 0.2)
        p[f'convL{l}_pos_r_b'] = nrm(next(keys), (HALF,), 0.1)
        p[f'convL{l}_neg_l_w'] = nrm(next(keys), (2 * HALF, HALF), 0.2)
        p[f'convL{l}_neg_r_w'] = nrm(next(keys), (HALF, HALF), 0.2)
        p[f'convL{l}_neg_r_b'] = nrm(next(keys), (HALF,), 0.1)
    # discriminator Linear(2*EMB_DIM, 3)
    p['disc_w'] = nrm(next(keys), (2 * EMB_DIM, 3), 0.2)
    p['disc_b'] = nrm(next(keys), (3,), 0.1)
    # GraphChannelAttLayer(3): constant 0.1
    p['fusion_w'] = jnp.full((3,), 0.1, jnp.float32)
    # LightGCN embeddings (std=0.1)
    p['lg_users_emb'] = nrm(next(keys), (NUM_USERS, EMB_DIM), 0.1)
    p['lg_items_emb'] = nrm(next(keys), (NUM_FOODS, EMB_DIM), 0.1)
    return p


if __name__ == "__main__":
    key = jax.random.PRNGKey(0)
    k1, k2, k3, k4, k5, k6 = jax.random.split(key, 6)

    user_x = jax.random.normal(k1, (NUM_USERS, USER_IN_DIM), jnp.float32)
    food_x = jax.random.normal(k2, (NUM_FOODS, FOOD_IN_DIM), jnp.float32)
    # edge_index: user (local) -> food (local), consumed as-is like the reference
    edge_index = jnp.stack([
        jax.random.randint(k3, (NUM_EDGES,), 0, NUM_USERS),
        jax.random.randint(k4, (NUM_EDGES,), 0, NUM_FOODS)]).astype(jnp.int32)
    pos_edge_index = jax.random.randint(k5, (2, NUM_POS_EDGES), 0,
                                        TOTAL_NODES).astype(jnp.int32)
    neg_edge_index = jax.random.randint(k6, (2, NUM_NEG_EDGES), 0,
                                        TOTAL_NODES).astype(jnp.int32)

    params = init_params(jax.random.PRNGKey(42))

    fwd = jax.jit(sgsl_forward)
    u_f, u_0, i_f, i_0 = fwd(params, user_x, food_x,
                             edge_index, pos_edge_index, neg_edge_index)
    jax.block_until_ready((u_f, u_0, i_f, i_0))

    assert u_f.shape == (NUM_USERS, EMB_DIM) and i_f.shape == (NUM_FOODS, EMB_DIM)
    assert u_0.shape == (NUM_USERS, EMB_DIM) and i_0.shape == (NUM_FOODS, EMB_DIM)
    assert bool(jnp.all(jnp.isfinite(u_f))) and bool(jnp.all(jnp.isfinite(i_f)))
    print("KERNEL_OK")
</pallas_src>

<mosaic_0001>
module attributes {stable_mosaic.version = 11 : i64} {
  func.func @sgsl_kernel(%arg0: memref<32x8xi32, #tpu.memory_space<vmem>>, %arg1: memref<16x48xf32, #tpu.memory_space<vmem>>, %arg2: memref<464x32xf32, #tpu.memory_space<vmem>>, %arg3: memref<16x32xf32, #tpu.memory_space<vmem>>, %arg4: memref<16x32xf32, #tpu.memory_space<vmem>>) attributes {dimension_semantics = [], scalar_prefetch = 0 : i64, scratch_operands = 0 : i64, tpu.core_type = #tpu.core_type<tc>} {
    %c0 = arith.constant 0 : index
    %c0_0 = arith.constant 0 : index
    %0 = vector.load %arg0[%c0, %c0_0] : memref<32x8xi32, #tpu.memory_space<vmem>>, vector<32x8xi32>
    %c0_1 = arith.constant 0 : index
    %c0_2 = arith.constant 0 : index
    %1 = vector.load %arg1[%c0_1, %c0_2] : memref<16x48xf32, #tpu.memory_space<vmem>>, vector<16x48xf32>
    %c0_3 = arith.constant 0 : index
    %c0_4 = arith.constant 0 : index
    %2 = vector.load %arg2[%c0_3, %c0_4] : memref<464x32xf32, #tpu.memory_space<vmem>>, vector<48x32xf32>
    %cst = arith.constant dense<0.000000e+00> : vector<16x32xf32>
    %3 = tpu.matmul %1, %2, %cst {dimension_numbers = #tpu.dot_dimension_numbers<[1], [0], [0], [1], [0, 0, 1, 1], [], []>} : vector<16x48xf32>, vector<48x32xf32>, vector<16x32xf32> -> vector<16x32xf32>
    %cst_5 = arith.constant 0.000000e+00 : f32
    %4 = vector.broadcast %cst_5 : f32 to vector<16x32xf32>
    %5 = arith.maximumf %3, %4 : vector<16x32xf32>
    %6 = tpu.iota {dimensions = array<i32: 1>} : vector<32x16xi32>
    %7 = vector.extract_strided_slice %0 {offsets = [0, 0], sizes = [32, 1], strides = [1, 1]} : vector<32x8xi32> to vector<32x1xi32>
    %8 = vector.broadcast %7 : vector<32x1xi32> to vector<32x16xi32>
    %9 = arith.cmpi eq, %6, %8 : vector<32x16xi32>
    %cst_6 = arith.constant 1.000000e+00 : f32
    %cst_7 = arith.constant 0.000000e+00 : f32
    %10 = vector.broadcast %cst_6 : f32 to vector<32x16xf32>
    %11 = vector.broadcast %cst_7 : f32 to vector<32x16xf32>
    %12 = arith.select %9, %10, %11 : vector<32x16xi1>, vector<32x16xf32>
    %cst_8 = arith.constant dense<0.000000e+00> : vector<32x32xf32>
    %13 = tpu.matmul %12, %5, %cst_8 {dimension_numbers = #tpu.dot_dimension_numbers<[1], [0], [0], [1], [0, 0, 1, 1], [], []>} : vector<32x16xf32>, vector<16x32xf32>, vector<32x32xf32> -> vector<32x32xf32>
    %14 = vector.extract_strided_slice %13 {offsets = [0, 0], sizes = [16, 32], strides = [1, 1]} : vector<32x32xf32> to vector<16x32xf32>
    %15 = vector.extract_strided_slice %13 {offsets = [16, 0], sizes = [16, 32], strides = [1, 1]} : vector<32x32xf32> to vector<16x32xf32>
    %16 = arith.mulf %14, %15 : vector<16x32xf32>
    %17 = arith.mulf %14, %14 : vector<16x32xf32>
    %18 = arith.mulf %15, %15 : vector<16x32xf32>
    %19 = tpu.concatenate %16, %17, %18 in 0 : vector<16x32xf32>, vector<16x32xf32>, vector<16x32xf32> -> vector<48x32xf32>
    %c336 = arith.constant 336 : index
    %c0_9 = arith.constant 0 : index
    %20 = vector.load %arg2[%c336, %c0_9] : memref<464x32xf32, #tpu.memory_space<vmem>>, vector<4x32xf32>
    %cst_10 = arith.constant dense<0.000000e+00> : vector<48x4xf32>
    %21 = tpu.matmul %19, %20, %cst_10 {dimension_numbers = #tpu.dot_dimension_numbers<[1], [1], [0], [0], [0, 0, 1, 0], [], []>} : vector<48x32xf32>, vector<4x32xf32>, vector<48x4xf32> -> vector<48x4xf32>
    %22 = vector.extract_strided_slice %21 {offsets = [0, 0], sizes = [16, 4], strides = [1, 1]} : vector<48x4xf32> to vector<16x4xf32>
    %23 = vector.extract_strided_slice %21 {offsets = [16, 0], sizes = [16, 4], strides = [1, 1]} : vector<48x4xf32> to vector<16x4xf32>
    %24 = vector.extract_strided_slice %21 {offsets = [32, 0], sizes = [16, 4], strides = [1, 1]} : vector<48x4xf32> to vector<16x4xf32>
    %25 = arith.mulf %23, %24 : vector<16x4xf32>
    %cst_11 = arith.constant 1.000000e-16 : f32
    %26 = vector.broadcast %cst_11 : f32 to vector<16x4xf32>
    %27 = arith.maximumf %25, %26 : vector<16x4xf32>
    %28 = math.rsqrt %27 : vector<16x4xf32>
    %29 = arith.mulf %22, %28 : vector<16x4xf32>
    %cst_12 = arith.constant dense<0.000000e+00> : vector<16xf32>
    %30 = vector.multi_reduction <add>, %29, %cst_12 [1] : vector<16x4xf32> to vector<16xf32>
    %31 = vector.shape_cast %30 : vector<16xf32> to vector<16x1xf32>
    %cst_13 = arith.constant 2.500000e-01 : f32
    %32 = vector.broadcast %cst_13 : f32 to vector<16x1xf32>
    %33 = arith.mulf %31, %32 : vector<16x1xf32>
    %cst_14 = arith.constant 3.000000e-01 : f32
    %34 = vector.broadcast %cst_14 : f32 to vector<16x1xf32>
    %35 = arith.cmpf olt, %33, %34 : vector<16x1xf32>
    %cst_15 = arith.constant 0.000000e+00 : f32
    %36 = vector.broadcast %cst_15 : f32 to vector<16x1xf32>
    %37 = arith.select %35, %36, %33 : vector<16x1xi1>, vector<16x1xf32>
    %38 = tpu.iota {dimensions = array<i32: 1>} : vector<32x16xi32>
    %39 = vector.extract_strided_slice %0 {offsets = [0, 1], sizes = [32, 1], strides = [1, 1]} : vector<32x8xi32> to vector<32x1xi32>
    %40 = vector.broadcast %39 : vector<32x1xi32> to vector<32x16xi32>
    %41 = arith.cmpi eq, %38, %40 : vector<32x16xi32>
    %cst_16 = arith.constant 1.000000e+00 : f32
    %cst_17 = arith.constant 0.000000e+00 : f32
    %42 = vector.broadcast %cst_16 : f32 to vector<32x16xf32>
    %43 = vector.broadcast %cst_17 : f32 to vector<32x16xf32>
    %44 = arith.select %41, %42, %43 : vector<32x16xi1>, vector<32x16xf32>
    %45 = arith.truncf %44 : vector<32x16xf32> to vector<32x16xbf16>
    %46 = tpu.iota {dimensions = array<i32: 1>} : vector<32x32xi32>
    %47 = vector.extract_strided_slice %0 {offsets = [0, 2], sizes = [32, 1], strides = [1, 1]} : vector<32x8xi32> to vector<32x1xi32>
    %48 = vector.broadcast %47 : vector<32x1xi32> to vector<32x32xi32>
    %49 = arith.cmpi eq, %46, %48 : vector<32x32xi32>
    %cst_18 = arith.constant 1.000000e+00 : f32
    %cst_19 = arith.constant 0.000000e+00 : f32
    %50 = vector.broadcast %cst_18 : f32 to vector<32x32xf32>
    %51 = vector.broadcast %cst_19 : f32 to vector<32x32xf32>
    %52 = arith.select %49, %50, %51 : vector<32x32xi1>, vector<32x32xf32>
    %53 = arith.truncf %52 : vector<32x32xf32> to vector<32x32xbf16>
    %cst_20 = arith.constant dense<0.000000e+00> : vector<32x16xf32>
    %54 = tpu.matmul %53, %45, %cst_20 {dimension_numbers = #tpu.dot_dimension_numbers<[0], [0], [1], [1], [0, 1, 1, 1], [], []>} : vector<32x32xbf16>, vector<32x16xbf16>, vector<32x16xf32> -> vector<32x16xf32>
    %cst_21 = arith.constant dense<0.000000e+00> : vector<32xf32>
    %55 = vector.multi_reduction <add>, %54, %cst_21 [1] : vector<32x16xf32> to vector<32xf32>
    %56 = vector.shape_cast %55 : vector<32xf32> to vector<32x1xf32>
    %cst_22 = arith.constant 1.000000e+00 : f32
    %57 = vector.broadcast %cst_22 : f32 to vector<32x1xf32>
    %58 = arith.maximumf %56, %57 : vector<32x1xf32>
    %59 = vector.broadcast %58 : vector<32x1xf32> to vector<32x16xf32>
    %60 = arith.divf %54, %59 : vector<32x16xf32>
    %c368 = arith.constant 368 : index
    %c0_23 = arith.constant 0 : index
    %61 = vector.load %arg2[%c368, %c0_23] : memref<464x32xf32, #tpu.memory_space<vmem>>, vector<16x32xf32>
    %cst_24 = arith.constant dense<0.000000e+00> : vector<32x32xf32>
    %62 = tpu.matmul %60, %61, %cst_24 {dimension_numbers = #tpu.dot_dimension_numbers<[1], [0], [0], [1], [0, 0, 1, 1], [], []>} : vector<32x16xf32>, vector<16x32xf32>, vector<32x32xf32> -> vector<32x32xf32>
    %63 = vector.extract_strided_slice %62 {offsets = [0, 0], sizes = [16, 32], strides = [1, 1]} : vector<32x32xf32> to vector<16x32xf32>
    %64 = vector.extract_strided_slice %62 {offsets = [16, 0], sizes = [16, 32], strides = [1, 1]} : vector<32x32xf32> to vector<16x32xf32>
    %65 = tpu.concatenate %63, %64, %61 in 1 : vector<16x32xf32>, vector<16x32xf32>, vector<16x32xf32> -> vector<16x96xf32>
    %c48 = arith.constant 48 : index
    %c0_25 = arith.constant 0 : index
    %66 = vector.load %arg2[%c48, %c0_25] : memref<464x32xf32, #tpu.memory_space<vmem>>, vector<96x32xf32>
    %cst_26 = arith.constant dense<0.000000e+00> : vector<16x32xf32>
    %67 = tpu.matmul %65, %66, %cst_26 {dimension_numbers = #tpu.dot_dimension_numbers<[1], [0], [0], [1], [0, 0, 1, 1], [], []>} : vector<16x96xf32>, vector<96x32xf32>, vector<16x32xf32> -> vector<16x32xf32>
    %c344 = arith.constant 344 : index
    %c0_27 = arith.constant 0 : index
    %68 = vector.load %arg2[%c344, %c0_27] : memref<464x32xf32, #tpu.memory_space<vmem>>, vector<1x32xf32>
    %69 = vector.broadcast %68 : vector<1x32xf32> to vector<16x32xf32>
    %70 = arith.addf %67, %69 : vector<16x32xf32>
    %cst_28 = arith.constant 0.000000e+00 : f32
    %71 = vector.broadcast %cst_28 : f32 to vector<16x32xf32>
    %72 = arith.maximumf %70, %71 : vector<16x32xf32>
    %cst_29 = arith.constant dense<0.000000e+00> : vector<32x32xf32>
    %73 = tpu.matmul %60, %72, %cst_29 {dimension_numbers = #tpu.dot_dimension_numbers<[1], [0], [0], [1], [0, 0, 1, 1], [], []>} : vector<32x16xf32>, vector<16x32xf32>, vector<32x32xf32> -> vector<32x32xf32>
    %74 = vector.extract_strided_slice %73 {offsets = [0, 0], sizes = [16, 32], strides = [1, 1]} : vector<32x32xf32> to vector<16x32xf32>
    %75 = vector.extract_strided_slice %73 {offsets = [16, 0], sizes = [16, 32], strides = [1, 1]} : vector<32x32xf32> to vector<16x32xf32>
    %76 = tpu.concatenate %74, %75, %72 in 1 : vector<16x32xf32>, vector<16x32xf32>, vector<16x32xf32> -> vector<16x96xf32>
    %c144 = arith.constant 144 : index
    %c0_30 = arith.constant 0 : index
    %77 = vector.load %arg2[%c144, %c0_30] : memref<464x32xf32, #tpu.memory_space<vmem>>, vector<96x32xf32>
    %cst_31 = arith.constant dense<0.000000e+00> : vector<16x32xf32>
    %78 = tpu.matmul %76, %77, %cst_31 {dimension_numbers = #tpu.dot_dimension_numbers<[1], [0], [0], [1], [0, 0, 1, 1], [], []>} : vector<16x96xf32>, vector<96x32xf32>, vector<16x32xf32> -> vector<16x32xf32>
    %c352 = arith.constant 352 : index
    %c0_32 = arith.constant 0 : index
    %79 = vector.load %arg2[%c352, %c0_32] : memref<464x32xf32, #tpu.memory_space<vmem>>, vector<1x32xf32>
    %80 = vector.broadcast %79 : vector<1x32xf32> to vector<16x32xf32>
    %81 = arith.addf %78, %80 : vector<16x32xf32>
    %cst_33 = arith.constant 0.000000e+00 : f32
    %82 = vector.broadcast %cst_33 : f32 to vector<16x32xf32>
    %83 = arith.maximumf %81, %82 : vector<16x32xf32>
    %cst_34 = arith.constant dense<0.000000e+00> : vector<32x32xf32>
    %84 = tpu.matmul %60, %83, %cst_34 {dimension_numbers = #tpu.dot_dimension_numbers<[1], [0], [0], [1], [0, 0, 1, 1], [], []>} : vector<32x16xf32>, vector<16x32xf32>, vector<32x32xf32> -> vector<32x32xf32>
    %85 = vector.extract_strided_slice %84 {offsets = [0, 0], sizes = [16, 32], strides = [1, 1]} : vector<32x32xf32> to vector<16x32xf32>
    %86 = vector.extract_strided_slice %84 {offsets = [16, 0], sizes = [16, 32], strides = [1, 1]} : vector<32x32xf32> to vector<16x32xf32>
    %87 = tpu.concatenate %85, %86, %83 in 1 : vector<16x32xf32>, vector<16x32xf32>, vector<16x32xf32> -> vector<16x96xf32>
    %c240 = arith.constant 240 : index
    %c0_35 = arith.constant 0 : index
    %88 = vector.load %arg2[%c240, %c0_35] : memref<464x32xf32, #tpu.memory_space<vmem>>, vector<96x32xf32>
    %cst_36 = arith.constant dense<0.000000e+00> : vector<16x32xf32>
    %89 = tpu.matmul %87, %88, %cst_36 {dimension_numbers = #tpu.dot_dimension_numbers<[1], [0], [0], [1], [0, 0, 1, 1], [], []>} : vector<16x96xf32>, vector<96x32xf32>, vector<16x32xf32> -> vector<16x32xf32>
    %c360 = arith.constant 360 : index
    %c0_37 = arith.constant 0 : index
    %90 = vector.load %arg2[%c360, %c0_37] : memref<464x32xf32, #tpu.memory_space<vmem>>, vector<1x32xf32>
    %91 = vector.broadcast %90 : vector<1x32xf32> to vector<16x32xf32>
    %92 = arith.addf %89, %91 : vector<16x32xf32>
    %cst_38 = arith.constant 0.000000e+00 : f32
    %93 = vector.broadcast %cst_38 : f32 to vector<16x32xf32>
    %94 = arith.maximumf %92, %93 : vector<16x32xf32>
    %95 = tpu.iota {dimensions = array<i32: 1>} : vector<32x16xi32>
    %96 = vector.extract_strided_slice %0 {offsets = [0, 3], sizes = [32, 1], strides = [1, 1]} : vector<32x8xi32> to vector<32x1xi32>
    %97 = vector.broadcast %96 : vector<32x1xi32> to vector<32x16xi32>
    %98 = arith.cmpi eq, %95, %97 : vector<32x16xi32>
    %cst_39 = arith.constant 1.000000e+00 : f32
    %cst_40 = arith.constant 0.000000e+00 : f32
    %99 = vector.broadcast %cst_39 : f32 to vector<32x16xf32>
    %100 = vector.broadcast %cst_40 : f32 to vector<32x16xf32>
    %101 = arith.select %98, %99, %100 : vector<32x16xi1>, vector<32x16xf32>
    %cst_41 = arith.constant dense<0.000000e+00> : vector<32x32xf32>
    %102 = tpu.matmul %101, %94, %cst_41 {dimension_numbers = #tpu.dot_dimension_numbers<[1], [0], [0], [1], [0, 0, 1, 1], [], []>} : vector<32x16xf32>, vector<16x32xf32>, vector<32x32xf32> -> vector<32x32xf32>
    %103 = vector.extract_strided_slice %102 {offsets = [0, 0], sizes = [16, 32], strides = [1, 1]} : vector<32x32xf32> to vector<16x32xf32>
    %104 = vector.extract_strided_slice %102 {offsets = [16, 0], sizes = [16, 32], strides = [1, 1]} : vector<32x32xf32> to vector<16x32xf32>
    %105 = tpu.concatenate %103, %104 in 1 : vector<16x32xf32>, vector<16x32xf32> -> vector<16x64xf32>
    %c384 = arith.constant 384 : index
    %c0_42 = arith.constant 0 : index
    %106 = vector.load %arg2[%c384, %c0_42] : memref<464x32xf32, #tpu.memory_space<vmem>>, vector<64x32xf32>
    %cst_43 = arith.constant dense<0.000000e+00> : vector<16x32xf32>
    %107 = tpu.matmul %105, %106, %cst_43 {dimension_numbers = #tpu.dot_dimension_numbers<[1], [0], [0], [1], [0, 0, 1, 1], [], []>} : vector<16x64xf32>, vector<64x32xf32>, vector<16x32xf32> -> vector<16x32xf32>
    %c448 = arith.constant 448 : index
    %c0_44 = arith.constant 0 : index
    %108 = vector.load %arg2[%c448, %c0_44] : memref<464x32xf32, #tpu.memory_space<vmem>>, vector<1x32xf32>
    %109 = vector.broadcast %108 : vector<1x32xf32> to vector<16x32xf32>
    %110 = arith.addf %107, %109 : vector<16x32xf32>
    %111 = vector.extract_strided_slice %110 {offsets = [0, 0], sizes = [16, 3], strides = [1, 1]} : vector<16x32xf32> to vector<16x3xf32>
    %cst_45 = arith.constant dense<0xFF800000> : vector<16xf32>
    %112 = vector.multi_reduction <maximumf>, %111, %cst_45 [1] : vector<16x3xf32> to vector<16xf32>
    %113 = vector.shape_cast %112 : vector<16xf32> to vector<16x1xf32>
    %114 = tpu.iota {dimensions = array<i32: 1>} : vector<16x3xi32>
    %115 = arith.sitofp %114 : vector<16x3xi32> to vector<16x3xf32>
    %116 = vector.broadcast %113 : vector<16x1xf32> to vector<16x3xf32>
    %117 = arith.cmpf oge, %111, %116 : vector<16x3xf32>
    %cst_46 = arith.constant 3.000000e+00 : f32
    %118 = vector.broadcast %cst_46 : f32 to vector<16x3xf32>
    %119 = arith.select %117, %115, %118 : vector<16x3xi1>, vector<16x3xf32>
    %cst_47 = arith.constant dense<0x7F800000> : vector<16xf32>
    %120 = vector.multi_reduction <minimumf>, %119, %cst_47 [1] : vector<16x3xf32> to vector<16xf32>
    %121 = vector.shape_cast %120 : vector<16xf32> to vector<16x1xf32>
    %cst_48 = arith.constant 1.000000e+00 : f32
    %122 = vector.broadcast %cst_48 : f32 to vector<16x1xf32>
    %123 = arith.subf %121, %122 : vector<16x1xf32>
    %c456 = arith.constant 456 : index
    %c0_49 = arith.constant 0 : index
    %124 = vector.load %arg2[%c456, %c0_49] : memref<464x32xf32, #tpu.memory_space<vmem>>, vector<1x32xf32>
    %125 = math.absf %37 : vector<16x1xf32>
    %cst_50 = arith.constant dense<0.000000e+00> : vector<1xf32>
    %126 = vector.multi_reduction <add>, %125, %cst_50 [0] : vector<16x1xf32> to vector<1xf32>
    %127 = vector.shape_cast %126 : vector<1xf32> to vector<1x1xf32>
    %cst_51 = arith.constant 9.99999996E-13 : f32
    %128 = vector.broadcast %cst_51 : f32 to vector<1x1xf32>
    %129 = arith.maximumf %127, %128 : vector<1x1xf32>
    %130 = tpu.reciprocal %129 {approx = true} : vector<1x1xf32> -> vector<1x1xf32>
    %131 = vector.broadcast %130 : vector<1x1xf32> to vector<16x1xf32>
    %132 = arith.mulf %37, %131 : vector<16x1xf32>
    %133 = math.absf %123 : vector<16x1xf32>
    %cst_52 = arith.constant dense<0.000000e+00> : vector<1xf32>
    %134 = vector.multi_reduction <add>, %133, %cst_52 [0] : vector<16x1xf32> to vector<1xf32>
    %135 = vector.shape_cast %134 : vector<1xf32> to vector<1x1xf32>
    %cst_53 = arith.constant 9.99999996E-13 : f32
    %136 = vector.broadcast %cst_53 : f32 to vector<1x1xf32>
    %137 = arith.maximumf %135, %136 : vector<1x1xf32>
    %138 = tpu.reciprocal %137 {approx = true} : vector<1x1xf32> -> vector<1x1xf32>
    %139 = vector.broadcast %138 : vector<1x1xf32> to vector<16x1xf32>
    %140 = arith.mulf %123, %139 : vector<16x1xf32>
    %141 = vector.extract_strided_slice %124 {offsets = [0, 0], sizes = [1, 1], strides = [1, 1]} : vector<1x32xf32> to vector<1x1xf32>
    %cst_54 = arith.constant 6.250000e-02 : f32
    %142 = vector.broadcast %cst_54 : f32 to vector<1x1xf32>
    %143 = arith.mulf %141, %142 : vector<1x1xf32>
    %144 = vector.extract_strided_slice %124 {offsets = [0, 1], sizes = [1, 1], strides = [1, 1]} : vector<1x32xf32> to vector<1x1xf32>
    %145 = vector.broadcast %144 : vector<1x1xf32> to vector<16x1xf32>
    %146 = arith.mulf %145, %132 : vector<16x1xf32>
    %147 = vector.broadcast %143 : vector<1x1xf32> to vector<16x1xf32>
    %148 = arith.addf %147, %146 : vector<16x1xf32>
    %149 = vector.extract_strided_slice %124 {offsets = [0, 2], sizes = [1, 1], strides = [1, 1]} : vector<1x32xf32> to vector<1x1xf32>
    %150 = vector.broadcast %149 : vector<1x1xf32> to vector<16x1xf32>
    %151 = arith.mulf %150, %140 : vector<16x1xf32>
    %152 = arith.addf %148, %151 : vector<16x1xf32>
    %cst_55 = arith.constant 5.000000e-01 : f32
    %153 = vector.broadcast %cst_55 : f32 to vector<16x1xf32>
    %154 = arith.cmpf ogt, %152, %153 : vector<16x1xf32>
    %cst_56 = arith.constant 1.000000e+00 : f32
    %cst_57 = arith.constant 0.000000e+00 : f32
    %155 = vector.broadcast %cst_56 : f32 to vector<16x1xf32>
    %156 = vector.broadcast %cst_57 : f32 to vector<16x1xf32>
    %157 = arith.select %154, %155, %156 : vector<16x1xi1>, vector<16x1xf32>
    %158 = vector.extract_strided_slice %101 {offsets = [0, 0], sizes = [16, 16], strides = [1, 1]} : vector<32x16xf32> to vector<16x16xf32>
    %159 = arith.truncf %158 : vector<16x16xf32> to vector<16x16xbf16>
    %160 = vector.extract_strided_slice %101 {offsets = [16, 0], sizes = [16, 16], strides = [1, 1]} : vector<32x16xf32> to vector<16x16xf32>
    %161 = vector.broadcast %157 : vector<16x1xf32> to vector<16x16xf32>
    %162 = arith.mulf %161, %160 : vector<16x16xf32>
    %163 = arith.truncf %162 : vector<16x16xf32> to vector<16x16xbf16>
    %cst_58 = arith.constant dense<0.000000e+00> : vector<16x16xf32>
    %164 = tpu.matmul %159, %163, %cst_58 {dimension_numbers = #tpu.dot_dimension_numbers<[0], [0], [1], [1], [0, 1, 1, 1], [], []>} : vector<16x16xbf16>, vector<16x16xbf16>, vector<16x16xf32> -> vector<16x16xf32>
    %cst_59 = arith.constant dense<0.000000e+00> : vector<16xf32>
    %165 = vector.multi_reduction <add>, %164, %cst_59 [1] : vector<16x16xf32> to vector<16xf32>
    %166 = vector.shape_cast %165 : vector<16xf32> to vector<16x1xf32>
    %cst_60 = arith.constant 0.000000e+00 : f32
    %167 = vector.broadcast %cst_60 : f32 to vector<16x1xf32>
    %168 = arith.cmpf ogt, %166, %167 : vector<16x1xf32>
    %cst_61 = arith.constant 0.000000e+00 : f32
    %169 = vector.broadcast %cst_61 : f32 to vector<16x1xf32>
    %170 = arith.cmpf ogt, %166, %169 : vector<16x1xf32>
    %cst_62 = arith.constant 1.000000e+00 : f32
    %171 = vector.broadcast %cst_62 : f32 to vector<16x1xf32>
    %172 = arith.select %170, %166, %171 : vector<16x1xi1>, vector<16x1xf32>
    %173 = math.rsqrt %172 : vector<16x1xf32>
    %cst_63 = arith.constant 0.000000e+00 : f32
    %174 = vector.broadcast %cst_63 : f32 to vector<16x1xf32>
    %175 = arith.select %168, %173, %174 : vector<16x1xi1>, vector<16x1xf32>
    %c0_64 = arith.constant 0 : index
    %c0_65 = arith.constant 0 : index
    %176 = vector.load %arg3[%c0_64, %c0_65] : memref<16x32xf32, #tpu.memory_space<vmem>>, vector<16x32xf32>
    %177 = vector.broadcast %175 : vector<16x1xf32> to vector<16x32xf32>
    %178 = arith.mulf %177, %176 : vector<16x32xf32>
    %cst_66 = arith.constant dense<0.000000e+00> : vector<16x32xf32>
    %179 = tpu.matmul %164, %178, %cst_66 {dimension_numbers = #tpu.dot_dimension_numbers<[1], [0], [0], [1], [0, 0, 1, 1], [], []>} : vector<16x16xf32>, vector<16x32xf32>, vector<16x32xf32> -> vector<16x32xf32>
    %180 = vector.broadcast %175 : vector<16x1xf32> to vector<16x32xf32>
    %181 = arith.mulf %180, %179 : vector<16x32xf32>
    %182 = arith.addf %176, %181 : vector<16x32xf32>
    %183 = vector.broadcast %175 : vector<16x1xf32> to vector<16x32xf32>
    %184 = arith.mulf %183, %181 : vector<16x32xf32>
    %cst_67 = arith.constant dense<0.000000e+00> : vector<16x32xf32>
    %185 = tpu.matmul %164, %184, %cst_67 {dimension_numbers = #tpu.dot_dimension_numbers<[1], [0], [0], [1], [0, 0, 1, 1], [], []>} : vector<16x16xf32>, vector<16x32xf32>, vector<16x32xf32> -> vector<16x32xf32>
    %186 = vector.broadcast %175 : vector<16x1xf32> to vector<16x32xf32>
    %187 = arith.mulf %186, %185 : vector<16x32xf32>
    %188 = arith.addf %182, %187 : vector<16x32xf32>
    %189 = vector.broadcast %175 : vector<16x1xf32> to vector<16x32xf32>
    %190 = arith.mulf %189, %187 : vector<16x32xf32>
    %cst_68 = arith.constant dense<0.000000e+00> : vector<16x32xf32>
    %191 = tpu.matmul %164, %190, %cst_68 {dimension_numbers = #tpu.dot_dimension_numbers<[1], [0], [0], [1], [0, 0, 1, 1], [], []>} : vector<16x16xf32>, vector<16x32xf32>, vector<16x32xf32> -> vector<16x32xf32>
    %192 = vector.broadcast %175 : vector<16x1xf32> to vector<16x32xf32>
    %193 = arith.mulf %192, %191 : vector<16x32xf32>
    %194 = arith.addf %188, %193 : vector<16x32xf32>
    %cst_69 = arith.constant 2.500000e-01 : f32
    %195 = vector.broadcast %cst_69 : f32 to vector<16x32xf32>
    %196 = arith.mulf %194, %195 : vector<16x32xf32>
    %c0_70 = arith.constant 0 : index
    %c0_71 = arith.constant 0 : index
    %197 = vector.load %arg4[%c0_70, %c0_71] : memref<16x32xf32, #tpu.memory_space<vmem>>, vector<16x32xf32>
    tpu.vector_store %arg4[%c0_70, %c0_71], %196 {strides = array<i32>} : memref<16x32xf32, #tpu.memory_space<vmem>>, vector<16x32xf32>,
    return
  }
}

</mosaic_0001>

<llo_original>
// kernel: mul.1
$region0: #{mul.1}
  #allocation0 [shape = 's32[1]{0}', space=sflag, size = 0x4, scoped, tag = 'scoped memory for mul.1']
  %s0 = inlined_call_operand.vmem [shape: f32[4,32], index: 0, kind: input, shape index: {}, may-alias: {0,1}]
  %s1 = inlined_call_operand.vmem [shape: f32[4,32], index: 1, kind: input, shape index: {}, may-alias: {0,1}]
  %s2 = inlined_call_operand.vmem [shape: f32[4,32], index: 2, kind: output, shape index: {}]
  %v3 = vld [vmem:[%s0] sm:$0xf]
  %v4 = vld [vmem:[%s1] sm:$0xf]
  %5 = xla_tuple %v3, %v4
  %6 = xla_tuple %5
  %v7 = vmul.f32 %v3, %v4
  %8 = xla_tuple %v7
  %9 = vst [vmem:[%s2] sm:$0xf] %v7

// kernel: sgsl_forward.1
$region0: #{sgsl_forward.1}
  #allocation0 [shape = 'u32[]', space=smem, size = 0x4, offset = 0x4, fixed_abs, tag = 'smem constant byte address 0x4 - core index']
  #allocation1 [shape = 'u32[144,128]{1,0:T(1,128)}', space=vmem, size = 0x12000, scoped, tag = 'internal scratch']
  %s0 = inlined_call_operand.vmem [shape: s32[32,8], index: 0, kind: input, shape index: {}]
  %s1 = inlined_call_operand.vmem [shape: f32[16,48], index: 1, kind: input, shape index: {}]
  %s2 = inlined_call_operand.vmem [shape: f32[464,32], index: 2, kind: input, shape index: {}]
  %s3 = inlined_call_operand.vmem [shape: f32[16,32], index: 3, kind: input, shape index: {}, may-alias: {3,4}]
  %s4 = inlined_call_operand.vmem [shape: f32[16,32], index: 4, kind: output, shape index: {}, may-alias: {3,4}]
  %s5 = sld [smem:[#allocation0]]
  $region26: #{sgsl_forward.1} parent=0
    _
  %s7 = ssub.s32 1, %s5
  %s8 = scalar_select 0, %s7, %s5
  // Predicated region
  $region2: #{sgsl_forward.1} parent=0 // pred_check
    _
  $region3: #{sgsl_forward.1} parent=0 // pred_check_branch
    %10 = sbr.rel (0) target = $region5
  $region4: #{sgsl_forward.1} parent=0 // pred_region
    _
  $region5: #{sgsl_forward.1} parent=0 // pred_fallthru
    _
  // Predicated region
  $region6: #{sgsl_forward.1} parent=0 // pred_check
    _
  $region7: #{sgsl_forward.1} parent=0 // pred_check_branch
    %12 = sbr.rel (0) target = $region9
  $region8: #{sgsl_forward.1} parent=0 // pred_region
    _
  $region9: #{sgsl_forward.1} parent=0 // pred_fallthru
    _
  // Predicated region
  $region10: #{sgsl_forward.1} parent=0 // pred_check
    _
  $region11: #{sgsl_forward.1} parent=0 // pred_check_branch
    %14 = sbr.rel (0) target = $region13
  $region12: #{sgsl_forward.1} parent=0 // pred_region
    _
  $region13: #{sgsl_forward.1} parent=0 // pred_fallthru
    _
  // Predicated region
  $region14: #{sgsl_forward.1} parent=0 // pred_check
    _
  $region15: #{sgsl_forward.1} parent=0 // pred_check_branch
    %16 = sbr.rel (0) target = $region17
  $region16: #{sgsl_forward.1} parent=0 // pred_region
    _
  $region17: #{sgsl_forward.1} parent=0 // pred_fallthru
    _
  %v18 = vld [vmem:[%s0] sm:$0xff]
  %v19 = vld [vmem:[%s0 + $0x8] sm:$0xff]
  %v20 = vld [vmem:[%s0 + $0x10] sm:$0xff]
  %v21 = vld [vmem:[%s0 + $0x18] sm:$0xff]
  %v22 = vld [vmem:[%s1] sm:$0xff]
  %v23 = vld [vmem:[%s1 + $0x8] sm:$0xff]
  %v24 = vld [vmem:[%s2] sm:$0xff]
  %v25 = vld [vmem:[%s2 + $0x8] sm:$0xff]
  %v26 = vld [vmem:[%s2 + $0x10] sm:$0xff]
  %v27 = vld [vmem:[%s2 + $0x18] sm:$0xff]
  %v28 = vld [vmem:[%s2 + $0x20] sm:$0xff]
  %v29 = vld [vmem:[%s2 + $0x28] sm:$0xff]
  %vm30 = vcmask 392192
  %v32 = vsel %vm30, %v22, 0
  %v35 = vsel %vm30, %v23, 0
  %37 = vmatprep.subr.mxu0 0.0
  %38 = vmatpush1.msra.mxu0 0.0
  %39 = vmatprep.subr.mxu0 0.0
  %40 = vmatpush1.msra.mxu0 0.0
  %41 = vmatprep.subr.mxu0 0.0
  %42 = vmatpush1.msra.mxu0 0.0
  %43 = vmatprep.subr.mxu0 0.0
  %44 = vmatpush1.msra.mxu0 0.0
  %45 = vmatprep.subr.mxu0 0.0
  %46 = vmatpush1.msra.mxu0 0.0
  %47 = vmatprep.subr.mxu0 0.0
  %48 = vmatpush1.msra.mxu0 0.0
  %49 = vmatprep.subr.mxu0 0.0
  %50 = vmatpush1.msra.mxu0 0.0
  %51 = vmatprep.subr.mxu0 0.0
  %52 = vmatpush1.msra.mxu0 0.0
  %53 = vmatprep.subr.mxu0 0.0
  %54 = vmatpush1.msra.mxu0 0.0
  %55 = vmatprep.subr.mxu0 0.0
  %56 = vmatpush1.msra.mxu0 0.0
  %57 = vmatprep.subr.mxu0 0.0
  %58 = vmatpush1.msra.mxu0 %v29
  %59 = vmatprep.subr.mxu0 0.0
  %60 = vmatpush1.msra.mxu0 %v28
  %61 = vmatprep.subr.mxu0 0.0
  %62 = vmatpush1.msra.mxu0 %v27
  %63 = vmatprep.subr.mxu0 0.0
  %64 = vmatpush1.msra.mxu0 %v26
  %65 = vmatprep.subr.mxu0 0.0
  %66 = vmatpush1.msra.mxu0 %v25
  %67 = vmatprep.subr.mxu0 0.0
  %68 = vmatpush1.msra.mxu0 %v24
  %69 = vmatprep.subr.mxu0 0.0
  %70 = vmatpush2.msra.mxu0 0.0
  %71 = vmatprep.subr.mxu0 0.0
  %72 = vmatpush2.msra.mxu0 0.0
  %73 = vmatprep.subr.mxu0 0.0
  %74 = vmatpush2.msra.mxu0 0.0
  %75 = vmatprep.subr.mxu0 0.0
  %76 = vmatpush2.msra.mxu0 0.0
  %77 = vmatprep.subr.mxu0 0.0
  %78 = vmatpush2.msra.mxu0 0.0
  %79 = vmatprep.subr.mxu0 0.0
  %80 = vmatpush2.msra.mxu0 0.0
  %81 = vmatprep.subr.mxu0 0.0
  %82 = vmatpush2.msra.mxu0 0.0
  %83 = vmatprep.subr.mxu0 0.0
  %84 = vmatpush2.msra.mxu0 0.0
  %85 = vmatprep.subr.mxu0 0.0
  %86 = vmatpush2.msra.mxu0 0.0
  %87 = vmatprep.subr.mxu0 0.0
  %88 = vmatpush2.msra.mxu0 0.0
  %89 = vmatprep.subr.mxu0 0.0
  %90 = vmatpush2.msra.mxu0 0.0
  %91 = vmatprep.subr.mxu0 0.0
  %92 = vmatpush2.msra.mxu0 0.0
  %93 = vmatprep.subr.mxu0 0.0
  %94 = vmatpush2.msra.mxu0 0.0
  %95 = vmatprep.subr.mxu0 0.0
  %96 = vmatpush2.msra.mxu0 0.0
  %97 = vmatprep.subr.mxu0 0.0
  %98 = vmatpush2.msra.mxu0 0.0
  %99 = vmatprep.subr.mxu0 0.0
  %100 = vmatpush2.msra.mxu0 0.0
  %101 = vmatprep.mubr.f32.mxu0 0.0
  %102 = vmatmul.mubr.f32.gmra.mxu0 %v32
  %v103 = vpop.f32.mrf.mxu0
  %v104 = vadd.f32 0.0, %v103
  %v105 = vpop.f32.mrf.mxu0
  %106 = vmatprep.mubr.f32.mxu0 0.0
  %107 = vmatmul.mubr.f32.gmra.mxu0 %v35
  %v108 = vpop.f32.mrf.mxu0
  %v109 = vadd.f32 0.0, %v108
  %v110 = vpop.f32.mrf.mxu0
  %111 = vdwg.mxu0
  %v112 = vmax.f32 %v104, 0.0
  %v113 = vmax.f32 %v109, 0.0
  %v114 = vlaneseq
  %v115 = vand.u32 %v114, 127
  %116 = vset.pattern.permute.xlu0 0
  %117 = vperm.xlu0 %116, %v18
  %v118 = vpop.permute.xlu0 %117
  %119 = vset.pattern.permute.xlu0 0
  %120 = vperm.xlu0 %119, %v19
  %v121 = vpop.permute.xlu0 %120
  %122 = vset.pattern.permute.xlu0 0
  %123 = vperm.xlu0 %122, %v20
  %v124 = vpop.permute.xlu0 %123
  %125 = vset.pattern.permute.xlu0 0
  %126 = vperm.xlu0 %125, %v21
  %v127 = vpop.permute.xlu0 %126
  %vm128 = vcmp.eq.s32.totalorder %v115, %v118
  %vm129 = vcmp.eq.s32.totalorder %v115, %v121
  %vm130 = vcmp.eq.s32.totalorder %v115, %v124
  %vm131 = vcmp.eq.s32.totalorder %v115, %v127
  %v132 = vsel %vm128, 1.0, 0.0
  %v133 = vsel %vm129, 1.0, 0.0
  %v134 = vsel %vm130, 1.0, 0.0
  %v135 = vsel %vm131, 1.0, 0.0
  %vm136 = vcmask 130048
  %v138 = vsel %vm136, %v132, 0
  %v141 = vsel %vm136, %v133, 0
  %v144 = vsel %vm136, %v134, 0
  %v147 = vsel %vm136, %v135, 0
  %149 = vmatprep.subr.mxu0 0.0
  %150 = vmatpush1.msra.mxu0 0.0
  %151 = vmatprep.subr.mxu0 0.0
  %152 = vmatpush1.msra.mxu0 0.0
  %153 = vmatprep.subr.mxu0 0.0
  %154 = vmatpush1.msra.mxu0 0.0
  %155 = vmatprep.subr.mxu0 0.0
  %156 = vmatpush1.msra.mxu0 0.0
  %157 = vmatprep.subr.mxu0 0.0
  %158 = vmatpush1.msra.mxu0 0.0
  %159 = vmatprep.subr.mxu0 0.0
  %160 = vmatpush1.msra.mxu0 0.0
  %161 = vmatprep.subr.mxu0 0.0
  %162 = vmatpush1.msra.mxu0 0.0
  %163 = vmatprep.subr.mxu0 0.0
  %164 = vmatpush1.msra.mxu0 0.0
  %165 = vmatprep.subr.mxu0 0.0
  %166 = vmatpush1.msra.mxu0 0.0
  %167 = vmatprep.subr.mxu0 0.0
  %168 = vmatpush1.msra.mxu0 0.0
  %169 = vmatprep.subr.mxu0 0.0
  %170 = vmatpush1.msra.mxu0 0.0
  %171 = vmatprep.subr.mxu0 0.0
  %172 = vmatpush1.msra.mxu0 0.0
  %173 = vmatprep.subr.mxu0 0.0
  %174 = vmatpush1.msra.mxu0 0.0
  %175 = vmatprep.subr.mxu0 0.0
  %176 = vmatpush1.msra.mxu0 0.0
  %177 = vmatprep.subr.mxu0 0.0
  %178 = vmatpush1.msra.mxu0 %v113
  %179 = vmatprep.subr.mxu0 0.0
  %180 = vmatpush1.msra.mxu0 %v112
  %181 = vmatprep.subr.mxu0 0.0
  %182 = vmatpush2.msra.mxu0 0.0
  %183 = vmatprep.subr.mxu0 0.0
  %184 = vmatpush2.msra.mxu0 0.0
  %185 = vmatprep.subr.mxu0 0.0
  %186 = vmatpush2.msra.mxu0 0.0
  %187 = vmatprep.subr.mxu0 0.0
  %188 = vmatpush2.msra.mxu0 0.0
  %189 = vmatprep.subr.mxu0 0.0
  %190 = vmatpush2.msra.mxu0 0.0
  %191 = vmatprep.subr.mxu0 0.0
  %192 = vmatpush2.msra.mxu0 0.0
  %193 = vmatprep.subr.mxu0 0.0
  %194 = vmatpush2.msra.mxu0 0.0
  %195 = vmatprep.subr.mxu0 0.0
  %196 = vmatpush2.msra.mxu0 0.0
  %197 = vmatprep.subr.mxu0 0.0
  %198 = vmatpush2.msra.mxu0 0.0
  %199 = vmatprep.subr.mxu0 0.0
  %200 = vmatpush2.msra.mxu0 0.0
  %201 = vmatprep.subr.mxu0 0.0
  %202 = vmatpush2.msra.mxu0 0.0
  %203 = vmatprep.subr.mxu0 0.0
  %204 = vmatpush2.msra.mxu0 0.0
  %205 = vmatprep.subr.mxu0 0.0
  %206 = vmatpush2.msra.mxu0 0.0
  %207 = vmatprep.subr.mxu0 0.0
  %208 = vmatpush2.msra.mxu0 0.0
  %209 = vmatprep.subr.mxu0 0.0
  %210 = vmatpush2.msra.mxu0 0.0
  %211 = vmatprep.subr.mxu0 0.0
  %212 = vmatpush2.msra.mxu0 0.0
  %213 = vmatprep.mubr.f32.mxu0 0.0
  %214 = vmatmul.mubr.f32.gmra.mxu0 %v138
  %v215 = vpop.f32.mrf.mxu0
  %v216 = vadd.f32 0.0, %v215
  %v217 = vpop.f32.mrf.mxu0
  %218 = vmatprep.mubr.f32.mxu0 0.0
  %219 = vmatmul.mubr.f32.gmra.mxu0 %v141
  %v220 = vpop.f32.mrf.mxu0
  %v221 = vadd.f32 0.0, %v220
  %v222 = vpop.f32.mrf.mxu0
  %223 = vmatprep.mubr.f32.mxu0 0.0
  %224 = vmatmul.mubr.f32.gmra.mxu0 %v144
  %v225 = vpop.f32.mrf.mxu0
  %v226 = vadd.f32 0.0, %v225
  %v227 = vpop.f32.mrf.mxu0
  %228 = vmatprep.mubr.f32.mxu0 0.0
  %229 = vmatmul.mubr.f32.gmra.mxu0 %v147
  %v230 = vpop.f32.mrf.mxu0
  %v231 = vadd.f32 0.0, %v230
  %v232 = vpop.f32.mrf.mxu0
  %233 = vdwg.mxu0
  %v234 = vmul.f32 %v216, %v226
  %v235 = vmul.f32 %v221, %v231
  %v236 = vmul.f32 %v216, %v216
  %v237 = vmul.f32 %v221, %v221
  %v238 = vmul.f32 %v226, %v226
  %v239 = vmul.f32 %v231, %v231
  %v240 = vld [vmem:[%s2 + $0x150] sm:$0xf]
  %vm241 = vcmask 261120
  %v243 = vsel %vm241, %v234, 0
  %v246 = vsel %vm241, %v235, 0
  %v249 = vsel %vm241, %v236, 0
  %v252 = vsel %vm241, %v237, 0
  %v255 = vsel %vm241, %v238, 0
  %v258 = vsel %vm241, %v239, 0
  %v261 = vsel %vm241, %v240, 0
  %263 = vmatprep.subr.mxu0 0.0
  %264 = vmatpush1.xpose.msra.mxu0 0.0
  %265 = vmatprep.subr.mxu0 0.0
  %266 = vmatpush1.xpose.msra.mxu0 0.0
  %267 = vmatprep.subr.mxu0 0.0
  %268 = vmatpush1.xpose.msra.mxu0 0.0
  %269 = vmatprep.subr.mxu0 0.0
  %270 = vmatpush1.xpose.msra.mxu0 0.0
  %271 = vmatprep.subr.mxu0 0.0
  %272 = vmatpush1.xpose.msra.mxu0 0.0
  %273 = vmatprep.subr.mxu0 0.0
  %274 = vmatpush1.xpose.msra.mxu0 0.0
  %275 = vmatprep.subr.mxu0 0.0
  %276 = vmatpush1.xpose.msra.mxu0 0.0
  %277 = vmatprep.subr.mxu0 0.0
  %278 = vmatpush1.xpose.msra.mxu0 0.0
  %279 = vmatprep.subr.mxu0 0.0
  %280 = vmatpush1.xpose.msra.mxu0 0.0
  %281 = vmatprep.subr.mxu0 0.0
  %282 = vmatpush1.xpose.msra.mxu0 0.0
  %283 = vmatprep.subr.mxu0 0.0
  %284 = vmatpush1.xpose.msra.mxu0 0.0
  %285 = vmatprep.subr.mxu0 0.0
  %286 = vmatpush1.xpose.msra.mxu0 0.0
  %287 = vmatprep.subr.mxu0 0.0
  %288 = vmatpush1.xpose.msra.mxu0 0.0
  %289 = vmatprep.subr.mxu0 0.0
  %290 = vmatpush1.xpose.msra.mxu0 0.0
  %291 = vmatprep.subr.mxu0 0.0
  %292 = vmatpush1.xpose.msra.mxu0 0.0
  %293 = vmatprep.subr.mxu0 0.0
  %294 = vmatpush1.xpose.msra.mxu0 %v261
  %295 = vmatprep.subr.mxu0 0.0
  %296 = vmatpush2.xpose.msra.mxu0 0.0
  %297 = vmatprep.subr.mxu0 0.0
  %298 = vmatpush2.xpose.msra.mxu0 0.0
  %299 = vmatprep.subr.mxu0 0.0
  %300 = vmatpush2.xpose.msra.mxu0 0.0
  %301 = vmatprep.subr.mxu0 0.0
  %302 = vmatpush2.xpose.msra.mxu0 0.0
  %303 = vmatprep.subr.mxu0 0.0
  %304 = vmatpush2.xpose.msra.mxu0 0.0
  %305 = vmatprep.subr.mxu0 0.0
  %306 = vmatpush2.xpose.msra.mxu0 0.0
  %307 = vmatprep.subr.mxu0 0.0
  %308 = vmatpush2.xpose.msra.mxu0 0.0
  %309 = vmatprep.subr.mxu0 0.0
  %310 = vmatpush2.xpose.msra.mxu0 0.0
  %311 = vmatprep.subr.mxu0 0.0
  %312 = vmatpush2.xpose.msra.mxu0 0.0
  %313 = vmatprep.subr.mxu0 0.0
  %314 = vmatpush2.xpose.msra.mxu0 0.0
  %315 = vmatprep.subr.mxu0 0.0
  %316 = vmatpush2.xpose.msra.mxu0 0.0
  %317 = vmatprep.subr.mxu0 0.0
  %318 = vmatpush2.xpose.msra.mxu0 0.0
  %319 = vmatprep.subr.mxu0 0.0
  %320 = vmatpush2.xpose.msra.mxu0 0.0
  %321 = vmatprep.subr.mxu0 0.0
  %322 = vmatpush2.xpose.msra.mxu0 0.0
  %323 = vmatprep.subr.mxu0 0.0
  %324 = vmatpush2.xpose.msra.mxu0 0.0
  %325 = vmatprep.subr.mxu0 0.0
  %326 = vmatpush2.xpose.msra.mxu0 0.0
  %327 = vmatprep.mubr.f32.mxu0 0.0
  %328 = vmatmul.mubr.f32.gmra.mxu0 %v243
  %v329 = vpop.f32.mrf.mxu0
  %v330 = vadd.f32 0.0, %v329
  %v331 = vpop.f32.mrf.mxu0
  %332 = vmatprep.mubr.f32.mxu0 0.0
  %333 = vmatmul.mubr.f32.gmra.mxu0 %v246
  %v334 = vpop.f32.mrf.mxu0
  %v335 = vadd.f32 0.0, %v334
  %v336 = vpop.f32.mrf.mxu0
  %337 = vmatprep.mubr.f32.mxu0 0.0
  %338 = vmatmul.mubr.f32.gmra.mxu0 %v249
  %v339 = vpop.f32.mrf.mxu0
  %v340 = vadd.f32 0.0, %v339
  %v341 = vpop.f32.mrf.mxu0
  %342 = vmatprep.mubr.f32.mxu0 0.0
  %343 = vmatmul.mubr.f32.gmra.mxu0 %v252
  %v344 = vpop.f32.mrf.mxu0
  %v345 = vadd.f32 0.0, %v344
  %v346 = vpop.f32.mrf.mxu0
  %347 = vmatprep.mubr.f32.mxu0 0.0
  %348 = vmatmul.mubr.f32.gmra.mxu0 %v255
  %v349 = vpop.f32.mrf.mxu0
  %v350 = vadd.f32 0.0, %v349
  %v351 = vpop.f32.mrf.mxu0
  %352 = vmatprep.mubr.f32.mxu0 0.0
  %353 = vmatmul.mubr.f32.gmra.mxu0 %v258
  %v354 = vpop.f32.mrf.mxu0
  %v355 = vadd.f32 0.0, %v354
  %v356 = vpop.f32.mrf.mxu0
  %357 = vdwg.mxu0
  %v358 = vmul.f32 %v340, %v350
  %v359 = vmul.f32 %v345, %v355
  %v360 = vmax.f32 %v358, 1e-16
  %v361 = vmax.f32 %v359, 1e-16
  %v362 = vrsqrt.pop %v360
  %v363 = vrsqrt.pop %v361
  %v364 = vmul.f32 %v330, %v362
  %v365 = vmul.f32 %v335, %v363
  %vm366 = vcmask 31744
  %v367 = vsel %vm366, %v364, 0.0
  %368 = vadd.xlane.f32.xlu0 %v367
  %v369 = vpop.xlane.xlu0 %368
  %v370 = vsel %vm366, %v365, 0.0
  %371 = vadd.xlane.f32.xlu0 %v370
  %v372 = vpop.xlane.xlu0 %371
  %v373 = vmul.f32 %v369, 0.25
  %v374 = vmul.f32 %v372, 0.25
  %vm375 = vcmp.lt.f32.partialorder %v373, 0.3
  %vm376 = vcmp.lt.f32.partialorder %v374, 0.3
  %v377 = vsel %vm375, 0.0, %v373
  %v378 = vsel %vm376, 0.0, %v374
  %379 = vset.pattern.permute.xlu0 1
  %380 = vperm.xlu0 %379, %v18
  %v381 = vpop.permute.xlu0 %380
  %382 = vset.pattern.permute.xlu0 1
  %383 = vperm.xlu0 %382, %v19
  %v384 = vpop.permute.xlu0 %383
  %385 = vset.pattern.permute.xlu0 1
  %386 = vperm.xlu0 %385, %v20
  %v387 = vpop.permute.xlu0 %386
  %388 = vset.pattern.permute.xlu0 1
  %389 = vperm.xlu0 %388, %v21
  %v390 = vpop.permute.xlu0 %389
  %vm391 = vcmp.eq.s32.totalorder %v115, %v381
  %vm392 = vcmp.eq.s32.totalorder %v115, %v384
  %vm393 = vcmp.eq.s32.totalorder %v115, %v387
  %vm394 = vcmp.eq.s32.totalorder %v115, %v390
  %v395 = vsel %vm391, 1.0, 0.0
  %v396 = vsel %vm392, 1.0, 0.0
  %v397 = vsel %vm393, 1.0, 0.0
  %v398 = vsel %vm394, 1.0, 0.0
  %v399 = vpack.c.bf16 %v396, %v395
  %v400 = vpack.c.bf16 %v398, %v397
  %401 = vset.pattern.permute.xlu0 2
  %402 = vperm.xlu0 %401, %v18
  %v403 = vpop.permute.xlu0 %402
  %404 = vset.pattern.permute.xlu0 2
  %405 = vperm.xlu0 %404, %v19
  %v406 = vpop.permute.xlu0 %405
  %407 = vset.pattern.permute.xlu0 2
  %408 = vperm.xlu0 %407, %v20
  %v409 = vpop.permute.xlu0 %408
  %410 = vset.pattern.permute.xlu0 2
  %411 = vperm.xlu0 %410, %v21
  %v412 = vpop.permute.xlu0 %411
  %vm413 = vcmp.eq.s32.totalorder %v115, %v403
  %vm414 = vcmp.eq.s32.totalorder %v115, %v406
  %vm415 = vcmp.eq.s32.totalorder %v115, %v409
  %vm416 = vcmp.eq.s32.totalorder %v115, %v412
  %v417 = vsel %vm413, 1.0, 0.0
  %v418 = vsel %vm414, 1.0, 0.0
  %v419 = vsel %vm415, 1.0, 0.0
  %v420 = vsel %vm416, 1.0, 0.0
  %v421 = vpack.c.bf16 %v418, %v417
  %v422 = vpack.c.bf16 %v420, %v419
  %423 = vxpose.xlu0.c.b16.start [1/8] %v421, 128
  %424 = vxpose.xlu0.c.b16.cont [2/8] %v422, 128
  %425 = vxpose.xlu0.c.b16.cont [3/8] 0, 128
  %426 = vxpose.xlu0.c.b16.cont [4/8] 0, 128
  %427 = vxpose.xlu0.c.b16.cont [5/8] 0, 128
  %428 = vxpose.xlu0.c.b16.cont [6/8] 0, 128
  %429 = vxpose.xlu0.c.b16.cont [7/8] 0, 128
  %430 = vxpose.xlu0.c.b16.end [8/8] 0, 128
  %v431 = vpop.trf.xlu0
  %v432 = vpop.trf.xlu0
  %v433 = vpop.trf.xlu0
  %v434 = vpop.trf.xlu0
  %v435 = vpop.trf.xlu0
  %v436 = vpop.trf.xlu0
  %v437 = vpop.trf.xlu0
  %v438 = vpop.trf.xlu0
  %v440 = vsel %vm241, %v431, 0
  %v443 = vsel %vm241, %v432, 0
  %445 = vmatprep.subr.bf16.mxu0 0
  %446 = vmatpush1.bf16.msra.mxu0 0
  %447 = vmatprep.subr.bf16.mxu0 0
  %448 = vmatpush1.bf16.msra.mxu0 0
  %449 = vmatprep.subr.bf16.mxu0 0
  %450 = vmatpush1.bf16.msra.mxu0 0
  %451 = vmatprep.subr.bf16.mxu0 0
  %452 = vmatpush1.bf16.msra.mxu0 0
  %453 = vmatprep.subr.bf16.mxu0 0
  %454 = vmatpush1.bf16.msra.mxu0 0
  %455 = vmatprep.subr.bf16.mxu0 0
  %456 = vmatpush1.bf16.msra.mxu0 0
  %457 = vmatprep.subr.bf16.mxu0 0
  %458 = vmatpush1.bf16.msra.mxu0 %v400
  %459 = vmatprep.subr.bf16.mxu0 0
  %460 = vmatpush1.bf16.msra.mxu0 %v399
  %461 = vmatprep.subr.bf16.mxu0 0
  %462 = vmatpush2.bf16.msra.mxu0 0
  %463 = vmatprep.subr.bf16.mxu0 0
  %464 = vmatpush2.bf16.msra.mxu0 0
  %465 = vmatprep.subr.bf16.mxu0 0
  %466 = vmatpush2.bf16.msra.mxu0 0
  %467 = vmatprep.subr.bf16.mxu0 0
  %468 = vmatpush2.bf16.msra.mxu0 0
  %469 = vmatprep.subr.bf16.mxu0 0
  %470 = vmatpush2.bf16.msra.mxu0 0
  %471 = vmatprep.subr.bf16.mxu0 0
  %472 = vmatpush2.bf16.msra.mxu0 0
  %473 = vmatprep.subr.bf16.mxu0 0
  %474 = vmatpush2.bf16.msra.mxu0 0
  %475 = vmatprep.subr.bf16.mxu0 0
  %476 = vmatpush2.bf16.msra.mxu0 0
  %477 = vmatprep.mubr.bf16.mxu0 0
  %478 = vmatmul.mubr.bf16.gmra.mxu0 %v440
  %v479 = vpop.f32.mrf.mxu0
  %v480 = vadd.f32 0.0, %v479
  %v481 = vpop.f32.mrf.mxu0
  %v482 = vpop.f32.mrf.mxu0
  %v483 = vadd.f32 0.0, %v482
  %v484 = vpop.f32.mrf.mxu0
  %485 = vmatprep.mubr.bf16.mxu0 0
  %486 = vmatmul.mubr.bf16.gmra.mxu0 %v443
  %v487 = vpop.f32.mrf.mxu0
  %v488 = vadd.f32 0.0, %v487
  %v489 = vpop.f32.mrf.mxu0
  %v490 = vpop.f32.mrf.mxu0
  %v491 = vadd.f32 0.0, %v490
  %v492 = vpop.f32.mrf.mxu0
  %493 = vdwg.mxu0
  %v494 = vsel %vm136, %v480, 0.0
  %495 = vadd.xlane.f32.xlu0 %v494
  %v496 = vpop.xlane.xlu0 %495
  %v497 = vsel %vm136, %v483, 0.0
  %498 = vadd.xlane.f32.xlu0 %v497
  %v499 = vpop.xlane.xlu0 %498
  %v500 = vsel %vm136, %v488, 0.0
  %501 = vadd.xlane.f32.xlu0 %v500
  %v502 = vpop.xlane.xlu0 %501
  %v503 = vsel %vm136, %v491, 0.0
  %504 = vadd.xlane.f32.xlu0 %v503
  %v505 = vpop.xlane.xlu0 %504
  %v506 = vmax.f32 %v496, 1.0
  %v507 = vmax.f32 %v499, 1.0
  %v508 = vmax.f32 %v502, 1.0
  %v509 = vmax.f32 %v505, 1.0
  %v510 = vrcp.pop %v506
  %v511 = vmul.f32 %v480, %v510
  %v512 = vrcp.pop %v507
  %v513 = vmul.f32 %v483, %v512
  %v514 = vrcp.pop %v508
  %v515 = vmul.f32 %v488, %v514
  %v516 = vrcp.pop %v509
  %v517 = vmul.f32 %v491, %v516
  %v518 = vld [vmem:[%s2 + $0x170] sm:$0xff]
  %v519 = vld [vmem:[%s2 + $0x178] sm:$0xff]
  %v521 = vsel %vm136, %v511, 0
  %v524 = vsel %vm136, %v513, 0
  %v527 = vsel %vm136, %v515, 0
  %v530 = vsel %vm136, %v517, 0
  %532 = vmatprep.subr.mxu0 0.0
  %533 = vmatpush1.msra.mxu0 0.0
  %534 = vmatprep.subr.mxu0 0.0
  %535 = vmatpush1.msra.mxu0 0.0
  %536 = vmatprep.subr.mxu0 0.0
  %537 = vmatpush1.msra.mxu0 0.0
  %538 = vmatprep.subr.mxu0 0.0
  %539 = vmatpush1.msra.mxu0 0.0
  %540 = vmatprep.subr.mxu0 0.0
  %541 = vmatpush1.msra.mxu0 0.0
  %542 = vmatprep.subr.mxu0 0.0
  %543 = vmatpush1.msra.mxu0 0.0
  %544 = vmatprep.subr.mxu0 0.0
  %545 = vmatpush1.msra.mxu0 0.0
  %546 = vmatprep.subr.mxu0 0.0
  %547 = vmatpush1.msra.mxu0 0.0
  %548 = vmatprep.subr.mxu0 0.0
  %549 = vmatpush1.msra.mxu0 0.0
  %550 = vmatprep.subr.mxu0 0.0
  %551 = vmatpush1.msra.mxu0 0.0
  %552 = vmatprep.subr.mxu0 0.0
  %553 = vmatpush1.msra.mxu0 0.0
  %554 = vmatprep.subr.mxu0 0.0
  %555 = vmatpush1.msra.mxu0 0.0
  %556 = vmatprep.subr.mxu0 0.0
  %557 = vmatpush1.msra.mxu0 0.0
  %558 = vmatprep.subr.mxu0 0.0
  %559 = vmatpush1.msra.mxu0 0.0
  %560 = vmatprep.subr.mxu0 0.0
  %561 = vmatpush1.msra.mxu0 %v519
  %562 = vmatprep.subr.mxu0 0.0
  %563 = vmatpush1.msra.mxu0 %v518
  %564 = vmatprep.subr.mxu0 0.0
  %565 = vmatpush2.msra.mxu0 0.0
  %566 = vmatprep.subr.mxu0 0.0
  %567 = vmatpush2.msra.mxu0 0.0
  %568 = vmatprep.subr.mxu0 0.0
  %569 = vmatpush2.msra.mxu0 0.0
  %570 = vmatprep.subr.mxu0 0.0
  %571 = vmatpush2.msra.mxu0 0.0
  %572 = vmatprep.subr.mxu0 0.0
  %573 = vmatpush2.msra.mxu0 0.0
  %574 = vmatprep.subr.mxu0 0.0
  %575 = vmatpush2.msra.mxu0 0.0
  %576 = vmatprep.subr.mxu0 0.0
  %577 = vmatpush2.msra.mxu0 0.0
  %578 = vmatprep.subr.mxu0 0.0
  %579 = vmatpush2.msra.mxu0 0.0
  %580 = vmatprep.subr.mxu0 0.0
  %581 = vmatpush2.msra.mxu0 0.0
  %582 = vmatprep.subr.mxu0 0.0
  %583 = vmatpush2.msra.mxu0 0.0
  %584 = vmatprep.subr.mxu0 0.0
  %585 = vmatpush2.msra.mxu0 0.0
  %586 = vmatprep.subr.mxu0 0.0
  %587 = vmatpush2.msra.mxu0 0.0
  %588 = vmatprep.subr.mxu0 0.0
  %589 = vmatpush2.msra.mxu0 0.0
  %590 = vmatprep.subr.mxu0 0.0
  %591 = vmatpush2.msra.mxu0 0.0
  %592 = vmatprep.subr.mxu0 0.0
  %593 = vmatpush2.msra.mxu0 0.0
  %594 = vmatprep.subr.mxu0 0.0
  %595 = vmatpush2.msra.mxu0 0.0
  %596 = vmatprep.mubr.f32.mxu0 0.0
  %597 = vmatmul.mubr.f32.gmra.mxu0 %v521
  %v598 = vpop.f32.mrf.mxu0
  %v599 = vadd.f32 0.0, %v598
  %v600 = vpop.f32.mrf.mxu0
  %601 = vmatprep.mubr.f32.mxu0 0.0
  %602 = vmatmul.mubr.f32.gmra.mxu0 %v524
  %v603 = vpop.f32.mrf.mxu0
  %v604 = vadd.f32 0.0, %v603
  %v605 = vpop.f32.mrf.mxu0
  %606 = vmatprep.mubr.f32.mxu0 0.0
  %607 = vmatmul.mubr.f32.gmra.mxu0 %v527
  %v608 = vpop.f32.mrf.mxu0
  %v609 = vadd.f32 0.0, %v608
  %v610 = vpop.f32.mrf.mxu0
  %611 = vmatprep.mubr.f32.mxu0 0.0
  %612 = vmatmul.mubr.f32.gmra.mxu0 %v530
  %v613 = vpop.f32.mrf.mxu0
  %v614 = vadd.f32 0.0, %v613
  %v615 = vpop.f32.mrf.mxu0
  %616 = vdwg.mxu0
  %619 = vrot.lane.b32.xlu0 %v609, 32
  %v620 = vpop.permute.xlu0 %619
  %621 = vrot.lane.b32.xlu0 %v614, 32
  %v622 = vpop.permute.xlu0 %621
  %627 = vrot.lane.b32.xlu0 %v518, 64
  %v628 = vpop.permute.xlu0 %627
  %629 = vrot.lane.b32.xlu0 %v519, 64
  %v630 = vpop.permute.xlu0 %629
  %v633 = vsel %vm241, %v599, %v620
  %v634 = vsel %vm241, %v604, %v622
  %vm635 = vcmask 523264
  %v636 = vsel %vm635, %v633, %v628
  %v637 = vsel %vm635, %v634, %v630
  %v638 = vld [vmem:[%s2 + $0x30] sm:$0xff]
  %v639 = vld [vmem:[%s2 + $0x38] sm:$0xff]
  %v640 = vld [vmem:[%s2 + $0x40] sm:$0xff]
  %v641 = vld [vmem:[%s2 + $0x48] sm:$0xff]
  %v642 = vld [vmem:[%s2 + $0x50] sm:$0xff]
  %v643 = vld [vmem:[%s2 + $0x58] sm:$0xff]
  %v644 = vld [vmem:[%s2 + $0x60] sm:$0xff]
  %v645 = vld [vmem:[%s2 + $0x68] sm:$0xff]
  %v646 = vld [vmem:[%s2 + $0x70] sm:$0xff]
  %v647 = vld [vmem:[%s2 + $0x78] sm:$0xff]
  %v648 = vld [vmem:[%s2 + $0x80] sm:$0xff]
  %v649 = vld [vmem:[%s2 + $0x88] sm:$0xff]
  %v650 = vld [vmem:[%s2 + $0x158] sm:$0x1]
  %v651 = vlaneseq
  %v652 = vshrl.u32 %v651, 7
  %v653 = vsub.s32 0, %v652
  %v654 = vrot.slane %v650, %v653
  %vm655 = vcmask 785408
  %v657 = vsel %vm655, %v636, 0
  %v660 = vsel %vm655, %v637, 0
  %662 = vmatprep.subr.mxu0 0.0
  %663 = vmatpush1.msra.mxu0 0.0
  %664 = vmatprep.subr.mxu0 0.0
  %665 = vmatpush1.msra.mxu0 0.0
  %666 = vmatprep.subr.mxu0 0.0
  %667 = vmatpush1.msra.mxu0 0.0
  %668 = vmatprep.subr.mxu0 0.0
  %669 = vmatpush1.msra.mxu0 0.0
  %670 = vmatprep.subr.mxu0 0.0
  %671 = vmatpush1.msra.mxu0 %v649
  %672 = vmatprep.subr.mxu0 0.0
  %673 = vmatpush1.msra.mxu0 %v648
  %674 = vmatprep.subr.mxu0 0.0
  %675 = vmatpush1.msra.mxu0 %v647
  %676 = vmatprep.subr.mxu0 0.0
  %677 = vmatpush1.msra.mxu0 %v646
  %678 = vmatprep.subr.mxu0 0.0
  %679 = vmatpush1.msra.mxu0 %v645
  %680 = vmatprep.subr.mxu0 0.0
  %681 = vmatpush1.msra.mxu0 %v644
  %682 = vmatprep.subr.mxu0 0.0
  %683 = vmatpush1.msra.mxu0 %v643
  %684 = vmatprep.subr.mxu0 0.0
  %685 = vmatpush1.msra.mxu0 %v642
  %686 = vmatprep.subr.mxu0 0.0
  %687 = vmatpush1.msra.mxu0 %v641
  %688 = vmatprep.subr.mxu0 0.0
  %689 = vmatpush1.msra.mxu0 %v640
  %690 = vmatprep.subr.mxu0 0.0
  %691 = vmatpush1.msra.mxu0 %v639
  %692 = vmatprep.subr.mxu0 0.0
  %693 = vmatpush1.msra.mxu0 %v638
  %694 = vmatprep.subr.mxu0 0.0
  %695 = vmatpush2.msra.mxu0 0.0
  %696 = vmatprep.subr.mxu0 0.0
  %697 = vmatpush2.msra.mxu0 0.0
  %698 = vmatprep.subr.mxu0 0.0
  %699 = vmatpush2.msra.mxu0 0.0
  %700 = vmatprep.subr.mxu0 0.0
  %701 = vmatpush2.msra.mxu0 0.0
  %702 = vmatprep.subr.mxu0 0.0
  %703 = vmatpush2.msra.mxu0 0.0
  %704 = vmatprep.subr.mxu0 0.0
  %705 = vmatpush2.msra.mxu0 0.0
  %706 = vmatprep.subr.mxu0 0.0
  %707 = vmatpush2.msra.mxu0 0.0
  %708 = vmatprep.subr.mxu0 0.0
  %709 = vmatpush2.msra.mxu0 0.0
  %710 = vmatprep.subr.mxu0 0.0
  %711 = vmatpush2.msra.mxu0 0.0
  %712 = vmatprep.subr.mxu0 0.0
  %713 = vmatpush2.msra.mxu0 0.0
  %714 = vmatprep.subr.mxu0 0.0
  %715 = vmatpush2.msra.mxu0 0.0
  %716 = vmatprep.subr.mxu0 0.0
  %717 = vmatpush2.msra.mxu0 0.0
  %718 = vmatprep.subr.mxu0 0.0
  %719 = vmatpush2.msra.mxu0 0.0
  %720 = vmatprep.subr.mxu0 0.0
  %721 = vmatpush2.msra.mxu0 0.0
  %722 = vmatprep.subr.mxu0 0.0
  %723 = vmatpush2.msra.mxu0 0.0
  %724 = vmatprep.subr.mxu0 0.0
  %725 = vmatpush2.msra.mxu0 0.0
  %726 = vmatprep.mubr.f32.mxu0 0.0
  %727 = vmatmul.mubr.f32.gmra.mxu0 %v657
  %v728 = vpop.f32.mrf.mxu0
  %v729 = vadd.f32 %v654, %v728
  %v730 = vpop.f32.mrf.mxu0
  %731 = vmatprep.mubr.f32.mxu0 0.0
  %732 = vmatmul.mubr.f32.gmra.mxu0 %v660
  %v733 = vpop.f32.mrf.mxu0
  %v734 = vadd.f32 %v654, %v733
  %v735 = vpop.f32.mrf.mxu0
  %736 = vdwg.mxu0
  %v737 = vmax.f32 %v729, 0.0
  %v738 = vmax.f32 %v734, 0.0
  %739 = vmatprep.subr.mxu0 0.0
  %740 = vmatpush1.msra.mxu0 0.0
  %741 = vmatprep.subr.mxu0 0.0
  %742 = vmatpush1.msra.mxu0 0.0
  %743 = vmatprep.subr.mxu0 0.0
  %744 = vmatpush1.msra.mxu0 0.0
  %745 = vmatprep.subr.mxu0 0.0
  %746 = vmatpush1.msra.mxu0 0.0
  %747 = vmatprep.subr.mxu0 0.0
  %748 = vmatpush1.msra.mxu0 0.0
  %749 = vmatprep.subr.mxu0 0.0
  %750 = vmatpush1.msra.mxu0 0.0
  %751 = vmatprep.subr.mxu0 0.0
  %752 = vmatpush1.msra.mxu0 0.0
  %753 = vmatprep.subr.mxu0 0.0
  %754 = vmatpush1.msra.mxu0 0.0
  %755 = vmatprep.subr.mxu0 0.0
  %756 = vmatpush1.msra.mxu0 0.0
  %757 = vmatprep.subr.mxu0 0.0
  %758 = vmatpush1.msra.mxu0 0.0
  %759 = vmatprep.subr.mxu0 0.0
  %760 = vmatpush1.msra.mxu0 0.0
  %761 = vmatprep.subr.mxu0 0.0
  %762 = vmatpush1.msra.mxu0 0.0
  %763 = vmatprep.subr.mxu0 0.0
  %764 = vmatpush1.msra.mxu0 0.0
  %765 = vmatprep.subr.mxu0 0.0
  %766 = vmatpush1.msra.mxu0 0.0
  %767 = vmatprep.subr.mxu0 0.0
  %768 = vmatpush1.msra.mxu0 %v738
  %769 = vmatprep.subr.mxu0 0.0
  %770 = vmatpush1.msra.mxu0 %v737
  %771 = vmatprep.subr.mxu0 0.0
  %772 = vmatpush2.msra.mxu0 0.0
  %773 = vmatprep.subr.mxu0 0.0
  %774 = vmatpush2.msra.mxu0 0.0
  %775 = vmatprep.subr.mxu0 0.0
  %776 = vmatpush2.msra.mxu0 0.0
  %777 = vmatprep.subr.mxu0 0.0
  %778 = vmatpush2.msra.mxu0 0.0
  %779 = vmatprep.subr.mxu0 0.0
  %780 = vmatpush2.msra.mxu0 0.0
  %781 = vmatprep.subr.mxu0 0.0
  %782 = vmatpush2.msra.mxu0 0.0
  %783 = vmatprep.subr.mxu0 0.0
  %784 = vmatpush2.msra.mxu0 0.0
  %785 = vmatprep.subr.mxu0 0.0
  %786 = vmatpush2.msra.mxu0 0.0
  %787 = vmatprep.subr.mxu0 0.0
  %788 = vmatpush2.msra.mxu0 0.0
  %789 = vmatprep.subr.mxu0 0.0
  %790 = vmatpush2.msra.mxu0 0.0
  %791 = vmatprep.subr.mxu0 0.0
  %792 = vmatpush2.msra.mxu0 0.0
  %793 = vmatprep.subr.mxu0 0.0
  %794 = vmatpush2.msra.mxu0 0.0
  %795 = vmatprep.subr.mxu0 0.0
  %796 = vmatpush2.msra.mxu0 0.0
  %797 = vmatprep.subr.mxu0 0.0
  %798 = vmatpush2.msra.mxu0 0.0
  %799 = vmatprep.subr.mxu0 0.0
  %800 = vmatpush2.msra.mxu0 0.0
  %801 = vmatprep.subr.mxu0 0.0
  %802 = vmatpush2.msra.mxu0 0.0
  %803 = vmatprep.mubr.f32.mxu0 0.0
  %804 = vmatmul.mubr.f32.gmra.mxu0 %v521
  %v805 = vpop.f32.mrf.mxu0
  %v806 = vadd.f32 0.0, %v805
  %v807 = vpop.f32.mrf.mxu0
  %808 = vmatprep.mubr.f32.mxu0 0.0
  %809 = vmatmul.mubr.f32.gmra.mxu0 %v524
  %v810 = vpop.f32.mrf.mxu0
  %v811 = vadd.f32 0.0, %v810
  %v812 = vpop.f32.mrf.mxu0
  %813 = vmatprep.mubr.f32.mxu0 0.0
  %814 = vmatmul.mubr.f32.gmra.mxu0 %v527
  %v815 = vpop.f32.mrf.mxu0
  %v816 = vadd.f32 0.0, %v815
  %v817 = vpop.f32.mrf.mxu0
  %818 = vmatprep.mubr.f32.mxu0 0.0
  %819 = vmatmul.mubr.f32.gmra.mxu0 %v530
  %v820 = vpop.f32.mrf.mxu0
  %v821 = vadd.f32 0.0, %v820
  %v822 = vpop.f32.mrf.mxu0
  %823 = vdwg.mxu0
  %826 = vrot.lane.b32.xlu0 %v816, 32
  %v827 = vpop.permute.xlu0 %826
  %828 = vrot.lane.b32.xlu0 %v821, 32
  %v829 = vpop.permute.xlu0 %828
  %834 = vrot.lane.b32.xlu0 %v737, 64
  %v835 = vpop.permute.xlu0 %834
  %836 = vrot.lane.b32.xlu0 %v738, 64
  %v837 = vpop.permute.xlu0 %836
  %v840 = vsel %vm241, %v806, %v827
  %v841 = vsel %vm241, %v811, %v829
  %v842 = vsel %vm635, %v840, %v835
  %v843 = vsel %vm635, %v841, %v837
  %v844 = vld [vmem:[%s2 + $0x90] sm:$0xff]
  %v845 = vld [vmem:[%s2 + $0x98] sm:$0xff]
  %v846 = vld [vmem:[%s2 + $0xa0] sm:$0xff]
  %v847 = vld [vmem:[%s2 + $0xa8] sm:$0xff]
  %v848 = vld [vmem:[%s2 + $0xb0] sm:$0xff]
  %v849 = vld [vmem:[%s2 + $0xb8] sm:$0xff]
  %v850 = vld [vmem:[%s2 + $0xc0] sm:$0xff]
  %v851 = vld [vmem:[%s2 + $0xc8] sm:$0xff]
  %v852 = vld [vmem:[%s2 + $0xd0] sm:$0xff]
  %v853 = vld [vmem:[%s2 + $0xd8] sm:$0xff]
  %v854 = vld [vmem:[%s2 + $0xe0] sm:$0xff]
  %v855 = vld [vmem:[%s2 + $0xe8] sm:$0xff]
  %v856 = vld [vmem:[%s2 + $0x160] sm:$0x1]
  %v857 = vlaneseq
  %v858 = vshrl.u32 %v857, 7
  %v859 = vsub.s32 0, %v858
  %v860 = vrot.slane %v856, %v859
  %v862 = vsel %vm655, %v842, 0
  %v865 = vsel %vm655, %v843, 0
  %867 = vmatprep.subr.mxu0 0.0
  %868 = vmatpush1.msra.mxu0 0.0
  %869 = vmatprep.subr.mxu0 0.0
  %870 = vmatpush1.msra.mxu0 0.0
  %871 = vmatprep.subr.mxu0 0.0
  %872 = vmatpush1.msra.mxu0 0.0
  %873 = vmatprep.subr.mxu0 0.0
  %874 = vmatpush1.msra.mxu0 0.0
  %875 = vmatprep.subr.mxu0 0.0
  %876 = vmatpush1.msra.mxu0 %v855
  %877 = vmatprep.subr.mxu0 0.0
  %878 = vmatpush1.msra.mxu0 %v854
  %879 = vmatprep.subr.mxu0 0.0
  %880 = vmatpush1.msra.mxu0 %v853
  %881 = vmatprep.subr.mxu0 0.0
  %882 = vmatpush1.msra.mxu0 %v852
  %883 = vmatprep.subr.mxu0 0.0
  %884 = vmatpush1.msra.mxu0 %v851
  %885 = vmatprep.subr.mxu0 0.0
  %886 = vmatpush1.msra.mxu0 %v850
  %887 = vmatprep.subr.mxu0 0.0
  %888 = vmatpush1.msra.mxu0 %v849
  %889 = vmatprep.subr.mxu0 0.0
  %890 = vmatpush1.msra.mxu0 %v848
  %891 = vmatprep.subr.mxu0 0.0
  %892 = vmatpush1.msra.mxu0 %v847
  %893 = vmatprep.subr.mxu0 0.0
  %894 = vmatpush1.msra.mxu0 %v846
  %895 = vmatprep.subr.mxu0 0.0
  %896 = vmatpush1.msra.mxu0 %v845
  %897 = vmatprep.subr.mxu0 0.0
  %898 = vmatpush1.msra.mxu0 %v844
  %899 = vmatprep.subr.mxu0 0.0
  %900 = vmatpush2.msra.mxu0 0.0
  %901 = vmatprep.subr.mxu0 0.0
  %902 = vmatpush2.msra.mxu0 0.0
  %903 = vmatprep.subr.mxu0 0.0
  %904 = vmatpush2.msra.mxu0 0.0
  %905 = vmatprep.subr.mxu0 0.0
  %906 = vmatpush2.msra.mxu0 0.0
  %907 = vmatprep.subr.mxu0 0.0
  %908 = vmatpush2.msra.mxu0 0.0
  %909 = vmatprep.subr.mxu0 0.0
  %910 = vmatpush2.msra.mxu0 0.0
  %911 = vmatprep.subr.mxu0 0.0
  %912 = vmatpush2.msra.mxu0 0.0
  %913 = vmatprep.subr.mxu0 0.0
  %914 = vmatpush2.msra.mxu0 0.0
  %915 = vmatprep.subr.mxu0 0.0
  %916 = vmatpush2.msra.mxu0 0.0
  %917 = vmatprep.subr.mxu0 0.0
  %918 = vmatpush2.msra.mxu0 0.0
  %919 = vmatprep.subr.mxu0 0.0
  %920 = vmatpush2.msra.mxu0 0.0
  %921 = vmatprep.subr.mxu0 0.0
  %922 = vmatpush2.msra.mxu0 0.0
  %923 = vmatprep.subr.mxu0 0.0
  %924 = vmatpush2.msra.mxu0 0.0
  %925 = vmatprep.subr.mxu0 0.0
  %926 = vmatpush2.msra.mxu0 0.0
  %927 = vmatprep.subr.mxu0 0.0
  %928 = vmatpush2.msra.mxu0 0.0
  %929 = vmatprep.subr.mxu0 0.0
  %930 = vmatpush2.msra.mxu0 0.0
  %931 = vmatprep.mubr.f32.mxu0 0.0
  %932 = vmatmul.mubr.f32.gmra.mxu0 %v862
  %v933 = vpop.f32.mrf.mxu0
  %v934 = vadd.f32 %v860, %v933
  %v935 = vpop.f32.mrf.mxu0
  %936 = vmatprep.mubr.f32.mxu0 0.0
  %937 = vmatmul.mubr.f32.gmra.mxu0 %v865
  %v938 = vpop.f32.mrf.mxu0
  %v939 = vadd.f32 %v860, %v938
  %v940 = vpop.f32.mrf.mxu0
  %941 = vdwg.mxu0
  %v942 = vmax.f32 %v934, 0.0
  %v943 = vmax.f32 %v939, 0.0
  %944 = vmatprep.subr.mxu0 0.0
  %945 = vmatpush1.msra.mxu0 0.0
  %946 = vmatprep.subr.mxu0 0.0
  %947 = vmatpush1.msra.mxu0 0.0
  %948 = vmatprep.subr.mxu0 0.0
  %949 = vmatpush1.msra.mxu0 0.0
  %950 = vmatprep.subr.mxu0 0.0
  %951 = vmatpush1.msra.mxu0 0.0
  %952 = vmatprep.subr.mxu0 0.0
  %953 = vmatpush1.msra.mxu0 0.0
  %954 = vmatprep.subr.mxu0 0.0
  %955 = vmatpush1.msra.mxu0 0.0
  %956 = vmatprep.subr.mxu0 0.0
  %957 = vmatpush1.msra.mxu0 0.0
  %958 = vmatprep.subr.mxu0 0.0
  %959 = vmatpush1.msra.mxu0 0.0
  %960 = vmatprep.subr.mxu0 0.0
  %961 = vmatpush1.msra.mxu0 0.0
  %962 = vmatprep.subr.mxu0 0.0
  %963 = vmatpush1.msra.mxu0 0.0
  %964 = vmatprep.subr.mxu0 0.0
  %965 = vmatpush1.msra.mxu0 0.0
  %966 = vmatprep.subr.mxu0 0.0
  %967 = vmatpush1.msra.mxu0 0.0
  %968 = vmatprep.subr.mxu0 0.0
  %969 = vmatpush1.msra.mxu0 0.0
  %970 = vmatprep.subr.mxu0 0.0
  %971 = vmatpush1.msra.mxu0 0.0
  %972 = vmatprep.subr.mxu0 0.0
  %973 = vmatpush1.msra.mxu0 %v943
  %974 = vmatprep.subr.mxu0 0.0
  %975 = vmatpush1.msra.mxu0 %v942
  %976 = vmatprep.subr.mxu0 0.0
  %977 = vmatpush2.msra.mxu0 0.0
  %978 = vmatprep.subr.mxu0 0.0
  %979 = vmatpush2.msra.mxu0 0.0
  %980 = vmatprep.subr.mxu0 0.0
  %981 = vmatpush2.msra.mxu0 0.0
  %982 = vmatprep.subr.mxu0 0.0
  %983 = vmatpush2.msra.mxu0 0.0
  %984 = vmatprep.subr.mxu0 0.0
  %985 = vmatpush2.msra.mxu0 0.0
  %986 = vmatprep.subr.mxu0 0.0
  %987 = vmatpush2.msra.mxu0 0.0
  %988 = vmatprep.subr.mxu0 0.0
  %989 = vmatpush2.msra.mxu0 0.0
  %990 = vmatprep.subr.mxu0 0.0
  %991 = vmatpush2.msra.mxu0 0.0
  %992 = vmatprep.subr.mxu0 0.0
  %993 = vmatpush2.msra.mxu0 0.0
  %994 = vmatprep.subr.mxu0 0.0
  %995 = vmatpush2.msra.mxu0 0.0
  %996 = vmatprep.subr.mxu0 0.0
  %997 = vmatpush2.msra.mxu0 0.0
  %998 = vmatprep.subr.mxu0 0.0
  %999 = vmatpush2.msra.mxu0 0.0
  %1000 = vmatprep.subr.mxu0 0.0
  %1001 = vmatpush2.msra.mxu0 0.0
  %1002 = vmatprep.subr.mxu0 0.0
  %1003 = vmatpush2.msra.mxu0 0.0
  %1004 = vmatprep.subr.mxu0 0.0
  %1005 = vmatpush2.msra.mxu0 0.0
  %1006 = vmatprep.subr.mxu0 0.0
  %1007 = vmatpush2.msra.mxu0 0.0
  %1008 = vmatprep.mubr.f32.mxu0 0.0
  %1009 = vmatmul.mubr.f32.gmra.mxu0 %v521
  %v1010 = vpop.f32.mrf.mxu0
  %v1011 = vadd.f32 0.0, %v1010
  %v1012 = vpop.f32.mrf.mxu0
  %1013 = vmatprep.mubr.f32.mxu0 0.0
  %1014 = vmatmul.mubr.f32.gmra.mxu0 %v524
  %v1015 = vpop.f32.mrf.mxu0
  %v1016 = vadd.f32 0.0, %v1015
  %v1017 = vpop.f32.mrf.mxu0
  %1018 = vmatprep.mubr.f32.mxu0 0.0
  %1019 = vmatmul.mubr.f32.gmra.mxu0 %v527
  %v1020 = vpop.f32.mrf.mxu0
  %v1021 = vadd.f32 0.0, %v1020
  %v1022 = vpop.f32.mrf.mxu0
  %1023 = vmatprep.mubr.f32.mxu0 0.0
  %1024 = vmatmul.mubr.f32.gmra.mxu0 %v530
  %v1025 = vpop.f32.mrf.mxu0
  %v1026 = vadd.f32 0.0, %v1025
  %v1027 = vpop.f32.mrf.mxu0
  %1028 = vdwg.mxu0
  %1031 = vrot.lane.b32.xlu0 %v1021, 32
  %v1032 = vpop.permute.xlu0 %1031
  %1033 = vrot.lane.b32.xlu0 %v1026, 32
  %v1034 = vpop.permute.xlu0 %1033
  %1039 = vrot.lane.b32.xlu0 %v942, 64
  %v1040 = vpop.permute.xlu0 %1039
  %1041 = vrot.lane.b32.xlu0 %v943, 64
  %v1042 = vpop.permute.xlu0 %1041
  %v1045 = vsel %vm241, %v1011, %v1032
  %v1046 = vsel %vm241, %v1016, %v1034
  %v1047 = vsel %vm635, %v1045, %v1040
  %v1048 = vsel %vm635, %v1046, %v1042
  %v1049 = vld [vmem:[%s2 + $0xf0] sm:$0xff]
  %v1050 = vld [vmem:[%s2 + $0xf8] sm:$0xff]
  %v1051 = vld [vmem:[%s2 + $0x100] sm:$0xff]
  %v1052 = vld [vmem:[%s2 + $0x108] sm:$0xff]
  %v1053 = vld [vmem:[%s2 + $0x110] sm:$0xff]
  %v1054 = vld [vmem:[%s2 + $0x118] sm:$0xff]
  %v1055 = vld [vmem:[%s2 + $0x120] sm:$0xff]
  %v1056 = vld [vmem:[%s2 + $0x128] sm:$0xff]
  %v1057 = vld [vmem:[%s2 + $0x130] sm:$0xff]
  %v1058 = vld [vmem:[%s2 + $0x138] sm:$0xff]
  %v1059 = vld [vmem:[%s2 + $0x140] sm:$0xff]
  %v1060 = vld [vmem:[%s2 + $0x148] sm:$0xff]
  %v1061 = vld [vmem:[%s2 + $0x168] sm:$0x1]
  %v1062 = vlaneseq
  %v1063 = vshrl.u32 %v1062, 7
  %v1064 = vsub.s32 0, %v1063
  %v1065 = vrot.slane %v1061, %v1064
  %v1067 = vsel %vm655, %v1047, 0
  %v1070 = vsel %vm655, %v1048, 0
  %1072 = vmatprep.subr.mxu0 0.0
  %1073 = vmatpush1.msra.mxu0 0.0
  %1074 = vmatprep.subr.mxu0 0.0
  %1075 = vmatpush1.msra.mxu0 0.0
  %1076 = vmatprep.subr.mxu0 0.0
  %1077 = vmatpush1.msra.mxu0 0.0
  %1078 = vmatprep.subr.mxu0 0.0
  %1079 = vmatpush1.msra.mxu0 0.0
  %1080 = vmatprep.subr.mxu0 0.0
  %1081 = vmatpush1.msra.mxu0 %v1060
  %1082 = vmatprep.subr.mxu0 0.0
  %1083 = vmatpush1.msra.mxu0 %v1059
  %1084 = vmatprep.subr.mxu0 0.0
  %1085 = vmatpush1.msra.mxu0 %v1058
  %1086 = vmatprep.subr.mxu0 0.0
  %1087 = vmatpush1.msra.mxu0 %v1057
  %1088 = vmatprep.subr.mxu0 0.0
  %1089 = vmatpush1.msra.mxu0 %v1056
  %1090 = vmatprep.subr.mxu0 0.0
  %1091 = vmatpush1.msra.mxu0 %v1055
  %1092 = vmatprep.subr.mxu0 0.0
  %1093 = vmatpush1.msra.mxu0 %v1054
  %1094 = vmatprep.subr.mxu0 0.0
  %1095 = vmatpush1.msra.mxu0 %v1053
  %1096 = vmatprep.subr.mxu0 0.0
  %1097 = vmatpush1.msra.mxu0 %v1052
  %1098 = vmatprep.subr.mxu0 0.0
  %1099 = vmatpush1.msra.mxu0 %v1051
  %1100 = vmatprep.subr.mxu0 0.0
  %1101 = vmatpush1.msra.mxu0 %v1050
  %1102 = vmatprep.subr.mxu0 0.0
  %1103 = vmatpush1.msra.mxu0 %v1049
  %1104 = vmatprep.subr.mxu0 0.0
  %1105 = vmatpush2.msra.mxu0 0.0
  %1106 = vmatprep.subr.mxu0 0.0
  %1107 = vmatpush2.msra.mxu0 0.0
  %1108 = vmatprep.subr.mxu0 0.0
  %1109 = vmatpush2.msra.mxu0 0.0
  %1110 = vmatprep.subr.mxu0 0.0
  %1111 = vmatpush2.msra.mxu0 0.0
  %1112 = vmatprep.subr.mxu0 0.0
  %1113 = vmatpush2.msra.mxu0 0.0
  %1114 = vmatprep.subr.mxu0 0.0
  %1115 = vmatpush2.msra.mxu0 0.0
  %1116 = vmatprep.subr.mxu0 0.0
  %1117 = vmatpush2.msra.mxu0 0.0
  %1118 = vmatprep.subr.mxu0 0.0
  %1119 = vmatpush2.msra.mxu0 0.0
  %1120 = vmatprep.subr.mxu0 0.0
  %1121 = vmatpush2.msra.mxu0 0.0
  %1122 = vmatprep.subr.mxu0 0.0
  %1123 = vmatpush2.msra.mxu0 0.0
  %1124 = vmatprep.subr.mxu0 0.0
  %1125 = vmatpush2.msra.mxu0 0.0
  %1126 = vmatprep.subr.mxu0 0.0
  %1127 = vmatpush2.msra.mxu0 0.0
  %1128 = vmatprep.subr.mxu0 0.0
  %1129 = vmatpush2.msra.mxu0 0.0
  %1130 = vmatprep.subr.mxu0 0.0
  %1131 = vmatpush2.msra.mxu0 0.0
  %1132 = vmatprep.subr.mxu0 0.0
  %1133 = vmatpush2.msra.mxu0 0.0
  %1134 = vmatprep.subr.mxu0 0.0
  %1135 = vmatpush2.msra.mxu0 0.0
  %1136 = vmatprep.mubr.f32.mxu0 0.0
  %1137 = vmatmul.mubr.f32.gmra.mxu0 %v1067
  %v1138 = vpop.f32.mrf.mxu0
  %v1139 = vadd.f32 %v1065, %v1138
  %v1140 = vpop.f32.mrf.mxu0
  %1141 = vmatprep.mubr.f32.mxu0 0.0
  %1142 = vmatmul.mubr.f32.gmra.mxu0 %v1070
  %v1143 = vpop.f32.mrf.mxu0
  %v1144 = vadd.f32 %v1065, %v1143
  %v1145 = vpop.f32.mrf.mxu0
  %1146 = vdwg.mxu0
  %v1147 = vmax.f32 %v1139, 0.0
  %v1148 = vmax.f32 %v1144, 0.0
  %1149 = vset.pattern.permute.xlu0 3
  %1150 = vperm.xlu0 %1149, %v18
  %v1151 = vpop.permute.xlu0 %1150
  %1152 = vset.pattern.permute.xlu0 3
  %1153 = vperm.xlu0 %1152, %v19
  %v1154 = vpop.permute.xlu0 %1153
  %1155 = vset.pattern.permute.xlu0 3
  %1156 = vperm.xlu0 %1155, %v20
  %v1157 = vpop.permute.xlu0 %1156
  %1158 = vset.pattern.permute.xlu0 3
  %1159 = vperm.xlu0 %1158, %v21
  %v1160 = vpop.permute.xlu0 %1159
  %vm1161 = vcmp.eq.s32.totalorder %v115, %v1151
  %vm1162 = vcmp.eq.s32.totalorder %v115, %v1154
  %vm1163 = vcmp.eq.s32.totalorder %v115, %v1157
  %vm1164 = vcmp.eq.s32.totalorder %v115, %v1160
  %v1165 = vsel %vm1161, 1.0, 0.0
  %v1166 = vsel %vm1162, 1.0, 0.0
  %v1167 = vsel %vm1163, 1.0, 0.0
  %v1168 = vsel %vm1164, 1.0, 0.0
  %v1170 = vsel %vm136, %v1165, 0
  %v1173 = vsel %vm136, %v1166, 0
  %v1176 = vsel %vm136, %v1167, 0
  %v1179 = vsel %vm136, %v1168, 0
  %1181 = vmatprep.subr.mxu0 0.0
  %1182 = vmatpush1.msra.mxu0 0.0
  %1183 = vmatprep.subr.mxu0 0.0
  %1184 = vmatpush1.msra.mxu0 0.0
  %1185 = vmatprep.subr.mxu0 0.0
  %1186 = vmatpush1.msra.mxu0 0.0
  %1187 = vmatprep.subr.mxu0 0.0
  %1188 = vmatpush1.msra.mxu0 0.0
  %1189 = vmatprep.subr.mxu0 0.0
  %1190 = vmatpush1.msra.mxu0 0.0
  %1191 = vmatprep.subr.mxu0 0.0
  %1192 = vmatpush1.msra.mxu0 0.0
  %1193 = vmatprep.subr.mxu0 0.0
  %1194 = vmatpush1.msra.mxu0 0.0
  %1195 = vmatprep.subr.mxu0 0.0
  %1196 = vmatpush1.msra.mxu0 0.0
  %1197 = vmatprep.subr.mxu0 0.0
  %1198 = vmatpush1.msra.mxu0 0.0
  %1199 = vmatprep.subr.mxu0 0.0
  %1200 = vmatpush1.msra.mxu0 0.0
  %1201 = vmatprep.subr.mxu0 0.0
  %1202 = vmatpush1.msra.mxu0 0.0
  %1203 = vmatprep.subr.mxu0 0.0
  %1204 = vmatpush1.msra.mxu0 0.0
  %1205 = vmatprep.subr.mxu0 0.0
  %1206 = vmatpush1.msra.mxu0 0.0
  %1207 = vmatprep.subr.mxu0 0.0
  %1208 = vmatpush1.msra.mxu0 0.0
  %1209 = vmatprep.subr.mxu0 0.0
  %1210 = vmatpush1.msra.mxu0 %v1148
  %1211 = vmatprep.subr.mxu0 0.0
  %1212 = vmatpush1.msra.mxu0 %v1147
  %1213 = vmatprep.subr.mxu0 0.0
  %1214 = vmatpush2.msra.mxu0 0.0
  %1215 = vmatprep.subr.mxu0 0.0
  %1216 = vmatpush2.msra.mxu0 0.0
  %1217 = vmatprep.subr.mxu0 0.0
  %1218 = vmatpush2.msra.mxu0 0.0
  %1219 = vmatprep.subr.mxu0 0.0
  %1220 = vmatpush2.msra.mxu0 0.0
  %1221 = vmatprep.subr.mxu0 0.0
  %1222 = vmatpush2.msra.mxu0 0.0
  %1223 = vmatprep.subr.mxu0 0.0
  %1224 = vmatpush2.msra.mxu0 0.0
  %1225 = vmatprep.subr.mxu0 0.0
  %1226 = vmatpush2.msra.mxu0 0.0
  %1227 = vmatprep.subr.mxu0 0.0
  %1228 = vmatpush2.msra.mxu0 0.0
  %1229 = vmatprep.subr.mxu0 0.0
  %1230 = vmatpush2.msra.mxu0 0.0
  %1231 = vmatprep.subr.mxu0 0.0
  %1232 = vmatpush2.msra.mxu0 0.0
  %1233 = vmatprep.subr.mxu0 0.0
  %1234 = vmatpush2.msra.mxu0 0.0
  %1235 = vmatprep.subr.mxu0 0.0
  %1236 = vmatpush2.msra.mxu0 0.0
  %1237 = vmatprep.subr.mxu0 0.0
  %1238 = vmatpush2.msra.mxu0 0.0
  %1239 = vmatprep.subr.mxu0 0.0
  %1240 = vmatpush2.msra.mxu0 0.0
  %1241 = vmatprep.subr.mxu0 0.0
  %1242 = vmatpush2.msra.mxu0 0.0
  %1243 = vmatprep.subr.mxu0 0.0
  %1244 = vmatpush2.msra.mxu0 0.0
  %1245 = vmatprep.mubr.f32.mxu0 0.0
  %1246 = vmatmul.mubr.f32.gmra.mxu0 %v1170
  %v1247 = vpop.f32.mrf.mxu0
  %v1248 = vadd.f32 0.0, %v1247
  %v1249 = vpop.f32.mrf.mxu0
  %1250 = vmatprep.mubr.f32.mxu0 0.0
  %1251 = vmatmul.mubr.f32.gmra.mxu0 %v1173
  %v1252 = vpop.f32.mrf.mxu0
  %v1253 = vadd.f32 0.0, %v1252
  %v1254 = vpop.f32.mrf.mxu0
  %1255 = vmatprep.mubr.f32.mxu0 0.0
  %1256 = vmatmul.mubr.f32.gmra.mxu0 %v1176
  %v1257 = vpop.f32.mrf.mxu0
  %v1258 = vadd.f32 0.0, %v1257
  %v1259 = vpop.f32.mrf.mxu0
  %1260 = vmatprep.mubr.f32.mxu0 0.0
  %1261 = vmatmul.mubr.f32.gmra.mxu0 %v1179
  %v1262 = vpop.f32.mrf.mxu0
  %v1263 = vadd.f32 0.0, %v1262
  %v1264 = vpop.f32.mrf.mxu0
  %1265 = vdwg.mxu0
  %1268 = vrot.lane.b32.xlu0 %v1258, 32
  %v1269 = vpop.permute.xlu0 %1268
  %1270 = vrot.lane.b32.xlu0 %v1263, 32
  %v1271 = vpop.permute.xlu0 %1270
  %v1274 = vsel %vm241, %v1248, %v1269
  %v1275 = vsel %vm241, %v1253, %v1271
  %v1276 = vld [vmem:[%s2 + $0x180] sm:$0xff]
  %v1277 = vld [vmem:[%s2 + $0x188] sm:$0xff]
  %v1278 = vld [vmem:[%s2 + $0x190] sm:$0xff]
  %v1279 = vld [vmem:[%s2 + $0x198] sm:$0xff]
  %v1280 = vld [vmem:[%s2 + $0x1a0] sm:$0xff]
  %v1281 = vld [vmem:[%s2 + $0x1a8] sm:$0xff]
  %v1282 = vld [vmem:[%s2 + $0x1b0] sm:$0xff]
  %v1283 = vld [vmem:[%s2 + $0x1b8] sm:$0xff]
  %v1284 = vld [vmem:[%s2 + $0x1c0] sm:$0x1]
  %v1285 = vlaneseq
  %v1286 = vshrl.u32 %v1285, 7
  %v1287 = vsub.s32 0, %v1286
  %v1288 = vrot.slane %v1284, %v1287
  %v1290 = vsel %vm635, %v1274, 0
  %v1293 = vsel %vm635, %v1275, 0
  %1295 = vmatprep.subr.mxu0 0.0
  %1296 = vmatpush1.msra.mxu0 0.0
  %1297 = vmatprep.subr.mxu0 0.0
  %1298 = vmatpush1.msra.mxu0 0.0
  %1299 = vmatprep.subr.mxu0 0.0
  %1300 = vmatpush1.msra.mxu0 0.0
  %1301 = vmatprep.subr.mxu0 0.0
  %1302 = vmatpush1.msra.mxu0 0.0
  %1303 = vmatprep.subr.mxu0 0.0
  %1304 = vmatpush1.msra.mxu0 0.0
  %1305 = vmatprep.subr.mxu0 0.0
  %1306 = vmatpush1.msra.mxu0 0.0
  %1307 = vmatprep.subr.mxu0 0.0
  %1308 = vmatpush1.msra.mxu0 0.0
  %1309 = vmatprep.subr.mxu0 0.0
  %1310 = vmatpush1.msra.mxu0 0.0
  %1311 = vmatprep.subr.mxu0 0.0
  %1312 = vmatpush1.msra.mxu0 %v1283
  %1313 = vmatprep.subr.mxu0 0.0
  %1314 = vmatpush1.msra.mxu0 %v1282
  %1315 = vmatprep.subr.mxu0 0.0
  %1316 = vmatpush1.msra.mxu0 %v1281
  %1317 = vmatprep.subr.mxu0 0.0
  %1318 = vmatpush1.msra.mxu0 %v1280
  %1319 = vmatprep.subr.mxu0 0.0
  %1320 = vmatpush1.msra.mxu0 %v1279
  %1321 = vmatprep.subr.mxu0 0.0
  %1322 = vmatpush1.msra.mxu0 %v1278
  %1323 = vmatprep.subr.mxu0 0.0
  %1324 = vmatpush1.msra.mxu0 %v1277
  %1325 = vmatprep.subr.mxu0 0.0
  %1326 = vmatpush1.msra.mxu0 %v1276
  %1327 = vmatprep.subr.mxu0 0.0
  %1328 = vmatpush2.msra.mxu0 0.0
  %1329 = vmatprep.subr.mxu0 0.0
  %1330 = vmatpush2.msra.mxu0 0.0
  %1331 = vmatprep.subr.mxu0 0.0
  %1332 = vmatpush2.msra.mxu0 0.0
  %1333 = vmatprep.subr.mxu0 0.0
  %1334 = vmatpush2.msra.mxu0 0.0
  %1335 = vmatprep.subr.mxu0 0.0
  %1336 = vmatpush2.msra.mxu0 0.0
  %1337 = vmatprep.subr.mxu0 0.0
  %1338 = vmatpush2.msra.mxu0 0.0
  %1339 = vmatprep.subr.mxu0 0.0
  %1340 = vmatpush2.msra.mxu0 0.0
  %1341 = vmatprep.subr.mxu0 0.0
  %1342 = vmatpush2.msra.mxu0 0.0
  %1343 = vmatprep.subr.mxu0 0.0
  %1344 = vmatpush2.msra.mxu0 0.0
  %1345 = vmatprep.subr.mxu0 0.0
  %1346 = vmatpush2.msra.mxu0 0.0
  %1347 = vmatprep.subr.mxu0 0.0
  %1348 = vmatpush2.msra.mxu0 0.0
  %1349 = vmatprep.subr.mxu0 0.0
  %1350 = vmatpush2.msra.mxu0 0.0
  %1351 = vmatprep.subr.mxu0 0.0
  %1352 = vmatpush2.msra.mxu0 0.0
  %1353 = vmatprep.subr.mxu0 0.0
  %1354 = vmatpush2.msra.mxu0 0.0
  %1355 = vmatprep.subr.mxu0 0.0
  %1356 = vmatpush2.msra.mxu0 0.0
  %1357 = vmatprep.subr.mxu0 0.0
  %1358 = vmatpush2.msra.mxu0 0.0
  %1359 = vmatprep.mubr.f32.mxu0 0.0
  %1360 = vmatmul.mubr.f32.gmra.mxu0 %v1290
  %v1361 = vpop.f32.mrf.mxu0
  %v1362 = vadd.f32 %v1288, %v1361
  %v1363 = vpop.f32.mrf.mxu0
  %1364 = vmatprep.mubr.f32.mxu0 0.0
  %1365 = vmatmul.mubr.f32.gmra.mxu0 %v1293
  %v1366 = vpop.f32.mrf.mxu0
  %v1367 = vadd.f32 %v1288, %v1366
  %v1368 = vpop.f32.mrf.mxu0
  %1369 = vdwg.mxu0
  %vm1370 = vcmask 23552
  %v1371 = vsel %vm1370, %v1362, -inf
  %1372 = vmax.xlane.f32.xlu0 %v1371
  %v1373 = vpop.xlane.xlu0 %1372
  %v1374 = vsel %vm1370, %v1367, -inf
  %1375 = vmax.xlane.f32.xlu0 %v1374
  %v1376 = vpop.xlane.xlu0 %1375
  %v1377 = vcvt.s32.f32 %v115
  %vm1378 = vcmp.ge.f32.partialorder %v1362, %v1373
  %vm1379 = vcmp.ge.f32.partialorder %v1367, %v1376
  %v1380 = vsel %vm1378, %v1377, 3.0
  %v1381 = vsel %vm1379, %v1377, 3.0
  %v1382 = vsel %vm1370, %v1380, inf
  %1383 = vmin.xlane.f32.xlu0 %v1382
  %v1384 = vpop.xlane.xlu0 %1383
  %v1385 = vsel %vm1370, %v1381, inf
  %1386 = vmin.xlane.f32.xlu0 %v1385
  %v1387 = vpop.xlane.xlu0 %1386
  %v1388 = vsub.f32 %v1384, 1.0
  %v1389 = vsub.f32 %v1387, 1.0
  %v1390 = vld [vmem:[%s2 + $0x1c8] sm:$0x1]
  %v1391 = vand.u32 2147483647, %v377
  %v1392 = vand.u32 2147483647, %v378
  %v1393 = vadd.f32 %v1391, %v1392
  %v1394 = vrot.slane %v1393, 4
  %v1395 = vadd.f32 %v1393, %v1394
  %v1396 = vrot.slane %v1395, 2
  %v1397 = vadd.f32 %v1395, %v1396
  %v1398 = vrot.slane %v1397, 1
  %v1399 = vadd.f32 %v1397, %v1398
  %v1400 = vmax.f32 %v1399, 1e-12
  %v1401 = vrcp.pop %v1400
  %v1402 = vmul.f32 %v377, %v1401
  %v1403 = vmul.f32 %v378, %v1401
  %v1404 = vand.u32 2147483647, %v1388
  %v1405 = vand.u32 2147483647, %v1389
  %v1406 = vadd.f32 %v1404, %v1405
  %v1407 = vrot.slane %v1406, 4
  %v1408 = vadd.f32 %v1406, %v1407
  %v1409 = vrot.slane %v1408, 2
  %v1410 = vadd.f32 %v1408, %v1409
  %v1411 = vrot.slane %v1410, 1
  %v1412 = vadd.f32 %v1410, %v1411
  %v1413 = vmax.f32 %v1412, 1e-12
  %v1414 = vrcp.pop %v1413
  %v1415 = vmul.f32 %v1388, %v1414
  %v1416 = vmul.f32 %v1389, %v1414
  %v1417 = vmul.f32 %v1390, 0.0625
  %v1418 = vlaneseq
  %v1419 = vshrl.u32 %v1418, 7
  %v1420 = vsub.s32 0, %v1419
  %v1421 = vrot.slane %v1390, %v1420
  %v1422 = vmul.f32 %v1421, %v1402
  %v1423 = vmul.f32 %v1421, %v1403
  %v1424 = vlaneseq
  %v1425 = vshrl.u32 %v1424, 7
  %v1426 = vsub.s32 0, %v1425
  %v1427 = vrot.slane %v1417, %v1426
  %1430 = vrot.lane.b32.xlu0 %v1422, 127
  %v1431 = vpop.permute.xlu0 %1430
  %1432 = vrot.lane.b32.xlu0 %v1423, 127
  %v1433 = vpop.permute.xlu0 %1432
  %v1436 = vadd.f32 %v1427, %v1431
  %v1437 = vadd.f32 %v1427, %v1433
  %v1438 = vmul.f32 %v1421, %v1415
  %v1439 = vmul.f32 %v1421, %v1416
  %1442 = vrot.lane.b32.xlu0 %v1438, 126
  %v1443 = vpop.permute.xlu0 %1442
  %1444 = vrot.lane.b32.xlu0 %v1439, 126
  %v1445 = vpop.permute.xlu0 %1444
  %v1448 = vadd.f32 %v1436, %v1443
  %v1449 = vadd.f32 %v1437, %v1445
  %vm1450 = vcmp.gt.f32.partialorder %v1448, 0.5
  %vm1451 = vcmp.gt.f32.partialorder %v1449, 0.5
  %v1452 = vsel %vm1450, 1.0, 0.0
  %v1453 = vsel %vm1451, 1.0, 0.0
  %v1454 = vpack.c.bf16 %v1166, %v1165
  %1456 = vset.pattern.permute.xlu0 0
  %1457 = vperm.xlu0 %1456, %v1452
  %v1458 = vpop.permute.xlu0 %1457
  %1461 = vset.pattern.permute.xlu0 0
  %1462 = vperm.xlu0 %1461, %v1453
  %v1463 = vpop.permute.xlu0 %1462
  %v1465 = vmul.f32 %v1458, %v1167
  %v1466 = vmul.f32 %v1463, %v1168
  %v1467 = vpack.c.bf16 %v1466, %v1465
  %1468 = vxpose.xlu0.c.b16.start [1/8] %v1454, 128
  %1469 = vxpose.xlu0.c.b16.cont [2/8] 0, 128
  %1470 = vxpose.xlu0.c.b16.cont [3/8] 0, 128
  %1471 = vxpose.xlu0.c.b16.cont [4/8] 0, 128
  %1472 = vxpose.xlu0.c.b16.cont [5/8] 0, 128
  %1473 = vxpose.xlu0.c.b16.cont [6/8] 0, 128
  %1474 = vxpose.xlu0.c.b16.cont [7/8] 0, 128
  %1475 = vxpose.xlu0.c.b16.end [8/8] 0, 128
  %v1476 = vpop.trf.xlu0
  %v1477 = vpop.trf.xlu0
  %v1478 = vpop.trf.xlu0
  %v1479 = vpop.trf.xlu0
  %v1480 = vpop.trf.xlu0
  %v1481 = vpop.trf.xlu0
  %v1482 = vpop.trf.xlu0
  %v1483 = vpop.trf.xlu0
  %v1485 = vsel %vm136, %v1476, 0
  %1487 = vmatprep.subr.bf16.mxu0 0
  %1488 = vmatpush1.bf16.msra.mxu0 0
  %1489 = vmatprep.subr.bf16.mxu0 0
  %1490 = vmatpush1.bf16.msra.mxu0 0
  %1491 = vmatprep.subr.bf16.mxu0 0
  %1492 = vmatpush1.bf16.msra.mxu0 0
  %1493 = vmatprep.subr.bf16.mxu0 0
  %1494 = vmatpush1.bf16.msra.mxu0 0
  %1495 = vmatprep.subr.bf16.mxu0 0
  %1496 = vmatpush1.bf16.msra.mxu0 0
  %1497 = vmatprep.subr.bf16.mxu0 0
  %1498 = vmatpush1.bf16.msra.mxu0 0
  %1499 = vmatprep.subr.bf16.mxu0 0
  %1500 = vmatpush1.bf16.msra.mxu0 0
  %1501 = vmatprep.subr.bf16.mxu0 0
  %1502 = vmatpush1.bf16.msra.mxu0 %v1467
  %1503 = vmatprep.subr.bf16.mxu0 0
  %1504 = vmatpush2.bf16.msra.mxu0 0
  %1505 = vmatprep.subr.bf16.mxu0 0
  %1506 = vmatpush2.bf16.msra.mxu0 0
  %1507 = vmatprep.subr.bf16.mxu0 0
  %1508 = vmatpush2.bf16.msra.mxu0 0
  %1509 = vmatprep.subr.bf16.mxu0 0
  %1510 = vmatpush2.bf16.msra.mxu0 0
  %1511 = vmatprep.subr.bf16.mxu0 0
  %1512 = vmatpush2.bf16.msra.mxu0 0
  %1513 = vmatprep.subr.bf16.mxu0 0
  %1514 = vmatpush2.bf16.msra.mxu0 0
  %1515 = vmatprep.subr.bf16.mxu0 0
  %1516 = vmatpush2.bf16.msra.mxu0 0
  %1517 = vmatprep.subr.bf16.mxu0 0
  %1518 = vmatpush2.bf16.msra.mxu0 0
  %1519 = vmatprep.mubr.bf16.mxu0 0
  %1520 = vmatmul.mubr.bf16.gmra.mxu0 %v1485
  %v1521 = vpop.f32.mrf.mxu0
  %v1522 = vadd.f32 0.0, %v1521
  %v1523 = vpop.f32.mrf.mxu0
  %v1524 = vpop.f32.mrf.mxu0
  %v1525 = vadd.f32 0.0, %v1524
  %v1526 = vpop.f32.mrf.mxu0
  %1527 = vdwg.mxu0
  %v1528 = vsel %vm136, %v1522, 0.0
  %1529 = vadd.xlane.f32.xlu0 %v1528
  %v1530 = vpop.xlane.xlu0 %1529
  %v1531 = vsel %vm136, %v1525, 0.0
  %1532 = vadd.xlane.f32.xlu0 %v1531
  %v1533 = vpop.xlane.xlu0 %1532
  %vm1534 = vcmp.gt.f32.partialorder %v1530, 0.0
  %vm1535 = vcmp.gt.f32.partialorder %v1533, 0.0
  %v1536 = vsel %vm1534, %v1530, 1.0
  %v1537 = vsel %vm1535, %v1533, 1.0
  %v1538 = vrsqrt.pop %v1536
  %v1539 = vrsqrt.pop %v1537
  %v1540 = vsel %vm1534, %v1538, 0.0
  %v1541 = vsel %vm1535, %v1539, 0.0
  %v1542 = vld [vmem:[%s3] sm:$0xff]
  %v1543 = vld [vmem:[%s3 + $0x8] sm:$0xff]
  %v1544 = vmul.f32 %v1540, %v1542
  %v1545 = vmul.f32 %v1541, %v1543
  %v1547 = vsel %vm136, %v1522, 0
  %v1550 = vsel %vm136, %v1525, 0
  %1552 = vmatprep.subr.mxu0 0.0
  %1553 = vmatpush1.msra.mxu0 0.0
  %1554 = vmatprep.subr.mxu0 0.0
  %1555 = vmatpush1.msra.mxu0 0.0
  %1556 = vmatprep.subr.mxu0 0.0
  %1557 = vmatpush1.msra.mxu0 0.0
  %1558 = vmatprep.subr.mxu0 0.0
  %1559 = vmatpush1.msra.mxu0 0.0
  %1560 = vmatprep.subr.mxu0 0.0
  %1561 = vmatpush1.msra.mxu0 0.0
  %1562 = vmatprep.subr.mxu0 0.0
  %1563 = vmatpush1.msra.mxu0 0.0
  %1564 = vmatprep.subr.mxu0 0.0
  %1565 = vmatpush1.msra.mxu0 0.0
  %1566 = vmatprep.subr.mxu0 0.0
  %1567 = vmatpush1.msra.mxu0 0.0
  %1568 = vmatprep.subr.mxu0 0.0
  %1569 = vmatpush1.msra.mxu0 0.0
  %1570 = vmatprep.subr.mxu0 0.0
  %1571 = vmatpush1.msra.mxu0 0.0
  %1572 = vmatprep.subr.mxu0 0.0
  %1573 = vmatpush1.msra.mxu0 0.0
  %1574 = vmatprep.subr.mxu0 0.0
  %1575 = vmatpush1.msra.mxu0 0.0
  %1576 = vmatprep.subr.mxu0 0.0
  %1577 = vmatpush1.msra.mxu0 0.0
  %1578 = vmatprep.subr.mxu0 0.0
  %1579 = vmatpush1.msra.mxu0 0.0
  %1580 = vmatprep.subr.mxu0 0.0
  %1581 = vmatpush1.msra.mxu0 %v1545
  %1582 = vmatprep.subr.mxu0 0.0
  %1583 = vmatpush1.msra.mxu0 %v1544
  %1584 = vmatprep.subr.mxu0 0.0
  %1585 = vmatpush2.msra.mxu0 0.0
  %1586 = vmatprep.subr.mxu0 0.0
  %1587 = vmatpush2.msra.mxu0 0.0
  %1588 = vmatprep.subr.mxu0 0.0
  %1589 = vmatpush2.msra.mxu0 0.0
  %1590 = vmatprep.subr.mxu0 0.0
  %1591 = vmatpush2.msra.mxu0 0.0
  %1592 = vmatprep.subr.mxu0 0.0
  %1593 = vmatpush2.msra.mxu0 0.0
  %1594 = vmatprep.subr.mxu0 0.0
  %1595 = vmatpush2.msra.mxu0 0.0
  %1596 = vmatprep.subr.mxu0 0.0
  %1597 = vmatpush2.msra.mxu0 0.0
  %1598 = vmatprep.subr.mxu0 0.0
  %1599 = vmatpush2.msra.mxu0 0.0
  %1600 = vmatprep.subr.mxu0 0.0
  %1601 = vmatpush2.msra.mxu0 0.0
  %1602 = vmatprep.subr.mxu0 0.0
  %1603 = vmatpush2.msra.mxu0 0.0
  %1604 = vmatprep.subr.mxu0 0.0
  %1605 = vmatpush2.msra.mxu0 0.0
  %1606 = vmatprep.subr.mxu0 0.0
  %1607 = vmatpush2.msra.mxu0 0.0
  %1608 = vmatprep.subr.mxu0 0.0
  %1609 = vmatpush2.msra.mxu0 0.0
  %1610 = vmatprep.subr.mxu0 0.0
  %1611 = vmatpush2.msra.mxu0 0.0
  %1612 = vmatprep.subr.mxu0 0.0
  %1613 = vmatpush2.msra.mxu0 0.0
  %1614 = vmatprep.subr.mxu0 0.0
  %1615 = vmatpush2.msra.mxu0 0.0
  %1616 = vmatprep.mubr.f32.mxu0 0.0
  %1617 = vmatmul.mubr.f32.gmra.mxu0 %v1547
  %v1618 = vpop.f32.mrf.mxu0
  %v1619 = vadd.f32 0.0, %v1618
  %v1620 = vpop.f32.mrf.mxu0
  %1621 = vmatprep.mubr.f32.mxu0 0.0
  %1622 = vmatmul.mubr.f32.gmra.mxu0 %v1550
  %v1623 = vpop.f32.mrf.mxu0
  %v1624 = vadd.f32 0.0, %v1623
  %v1625 = vpop.f32.mrf.mxu0
  %1626 = vdwg.mxu0
  %v1627 = vmul.f32 %v1540, %v1619
  %v1628 = vmul.f32 %v1541, %v1624
  %v1629 = vadd.f32 %v1542, %v1627
  %v1630 = vadd.f32 %v1543, %v1628
  %v1631 = vmul.f32 %v1540, %v1627
  %v1632 = vmul.f32 %v1541, %v1628
  %1633 = vmatprep.subr.mxu0 0.0
  %1634 = vmatpush1.msra.mxu0 0.0
  %1635 = vmatprep.subr.mxu0 0.0
  %1636 = vmatpush1.msra.mxu0 0.0
  %1637 = vmatprep.subr.mxu0 0.0
  %1638 = vmatpush1.msra.mxu0 0.0
  %1639 = vmatprep.subr.mxu0 0.0
  %1640 = vmatpush1.msra.mxu0 0.0
  %1641 = vmatprep.subr.mxu0 0.0
  %1642 = vmatpush1.msra.mxu0 0.0
  %1643 = vmatprep.subr.mxu0 0.0
  %1644 = vmatpush1.msra.mxu0 0.0
  %1645 = vmatprep.subr.mxu0 0.0
  %1646 = vmatpush1.msra.mxu0 0.0
  %1647 = vmatprep.subr.mxu0 0.0
  %1648 = vmatpush1.msra.mxu0 0.0
  %1649 = vmatprep.subr.mxu0 0.0
  %1650 = vmatpush1.msra.mxu0 0.0
  %1651 = vmatprep.subr.mxu0 0.0
  %1652 = vmatpush1.msra.mxu0 0.0
  %1653 = vmatprep.subr.mxu0 0.0
  %1654 = vmatpush1.msra.mxu0 0.0
  %1655 = vmatprep.subr.mxu0 0.0
  %1656 = vmatpush1.msra.mxu0 0.0
  %1657 = vmatprep.subr.mxu0 0.0
  %1658 = vmatpush1.msra.mxu0 0.0
  %1659 = vmatprep.subr.mxu0 0.0
  %1660 = vmatpush1.msra.mxu0 0.0
  %1661 = vmatprep.subr.mxu0 0.0
  %1662 = vmatpush1.msra.mxu0 %v1632
  %1663 = vmatprep.subr.mxu0 0.0
  %1664 = vmatpush1.msra.mxu0 %v1631
  %1665 = vmatprep.subr.mxu0 0.0
  %1666 = vmatpush2.msra.mxu0 0.0
  %1667 = vmatprep.subr.mxu0 0.0
  %1668 = vmatpush2.msra.mxu0 0.0
  %1669 = vmatprep.subr.mxu0 0.0
  %1670 = vmatpush2.msra.mxu0 0.0
  %1671 = vmatprep.subr.mxu0 0.0
  %1672 = vmatpush2.msra.mxu0 0.0
  %1673 = vmatprep.subr.mxu0 0.0
  %1674 = vmatpush2.msra.mxu0 0.0
  %1675 = vmatprep.subr.mxu0 0.0
  %1676 = vmatpush2.msra.mxu0 0.0
  %1677 = vmatprep.subr.mxu0 0.0
  %1678 = vmatpush2.msra.mxu0 0.0
  %1679 = vmatprep.subr.mxu0 0.0
  %1680 = vmatpush2.msra.mxu0 0.0
  %1681 = vmatprep.subr.mxu0 0.0
  %1682 = vmatpush2.msra.mxu0 0.0
  %1683 = vmatprep.subr.mxu0 0.0
  %1684 = vmatpush2.msra.mxu0 0.0
  %1685 = vmatprep.subr.mxu0 0.0
  %1686 = vmatpush2.msra.mxu0 0.0
  %1687 = vmatprep.subr.mxu0 0.0
  %1688 = vmatpush2.msra.mxu0 0.0
  %1689 = vmatprep.subr.mxu0 0.0
  %1690 = vmatpush2.msra.mxu0 0.0
  %1691 = vmatprep.subr.mxu0 0.0
  %1692 = vmatpush2.msra.mxu0 0.0
  %1693 = vmatprep.subr.mxu0 0.0
  %1694 = vmatpush2.msra.mxu0 0.0
  %1695 = vmatprep.subr.mxu0 0.0
  %1696 = vmatpush2.msra.mxu0 0.0
  %1697 = vmatprep.mubr.f32.mxu0 0.0
  %1698 = vmatmul.mubr.f32.gmra.mxu0 %v1547
  %v1699 = vpop.f32.mrf.mxu0
  %v1700 = vadd.f32 0.0, %v1699
  %v1701 = vpop.f32.mrf.mxu0
  %1702 = vmatprep.mubr.f32.mxu0 0.0
  %1703 = vmatmul.mubr.f32.gmra.mxu0 %v1550
  %v1704 = vpop.f32.mrf.mxu0
  %v1705 = vadd.f32 0.0, %v1704
  %v1706 = vpop.f32.mrf.mxu0
  %1707 = vdwg.mxu0
  %v1708 = vmul.f32 %v1540, %v1700
  %v1709 = vmul.f32 %v1541, %v1705
  %v1710 = vadd.f32 %v1629, %v1708
  %v1711 = vadd.f32 %v1630, %v1709
  %v1712 = vmul.f32 %v1540, %v1708
  %v1713 = vmul.f32 %v1541, %v1709
  %1714 = vmatprep.subr.mxu0 0.0
  %1715 = vmatpush1.msra.mxu0 0.0
  %1716 = vmatprep.subr.mxu0 0.0
  %1717 = vmatpush1.msra.mxu0 0.0
  %1718 = vmatprep.subr.mxu0 0.0
  %1719 = vmatpush1.msra.mxu0 0.0
  %1720 = vmatprep.subr.mxu0 0.0
  %1721 = vmatpush1.msra.mxu0 0.0
  %1722 = vmatprep.subr.mxu0 0.0
  %1723 = vmatpush1.msra.mxu0 0.0
  %1724 = vmatprep.subr.mxu0 0.0
  %1725 = vmatpush1.msra.mxu0 0.0
  %1726 = vmatprep.subr.mxu0 0.0
  %1727 = vmatpush1.msra.mxu0 0.0
  %1728 = vmatprep.subr.mxu0 0.0
  %1729 = vmatpush1.msra.mxu0 0.0
  %1730 = vmatprep.subr.mxu0 0.0
  %1731 = vmatpush1.msra.mxu0 0.0
  %1732 = vmatprep.subr.mxu0 0.0
  %1733 = vmatpush1.msra.mxu0 0.0
  %1734 = vmatprep.subr.mxu0 0.0
  %1735 = vmatpush1.msra.mxu0 0.0
  %1736 = vmatprep.subr.mxu0 0.0
  %1737 = vmatpush1.msra.mxu0 0.0
  %1738 = vmatprep.subr.mxu0 0.0
  %1739 = vmatpush1.msra.mxu0 0.0
  %1740 = vmatprep.subr.mxu0 0.0
  %1741 = vmatpush1.msra.mxu0 0.0
  %1742 = vmatprep.subr.mxu0 0.0
  %1743 = vmatpush1.msra.mxu0 %v1713
  %1744 = vmatprep.subr.mxu0 0.0
  %1745 = vmatpush1.msra.mxu0 %v1712
  %1746 = vmatprep.subr.mxu0 0.0
  %1747 = vmatpush2.msra.mxu0 0.0
  %1748 = vmatprep.subr.mxu0 0.0
  %1749 = vmatpush2.msra.mxu0 0.0
  %1750 = vmatprep.subr.mxu0 0.0
  %1751 = vmatpush2.msra.mxu0 0.0
  %1752 = vmatprep.subr.mxu0 0.0
  %1753 = vmatpush2.msra.mxu0 0.0
  %1754 = vmatprep.subr.mxu0 0.0
  %1755 = vmatpush2.msra.mxu0 0.0
  %1756 = vmatprep.subr.mxu0 0.0
  %1757 = vmatpush2.msra.mxu0 0.0
  %1758 = vmatprep.subr.mxu0 0.0
  %1759 = vmatpush2.msra.mxu0 0.0
  %1760 = vmatprep.subr.mxu0 0.0
  %1761 = vmatpush2.msra.mxu0 0.0
  %1762 = vmatprep.subr.mxu0 0.0
  %1763 = vmatpush2.msra.mxu0 0.0
  %1764 = vmatprep.subr.mxu0 0.0
  %1765 = vmatpush2.msra.mxu0 0.0
  %1766 = vmatprep.subr.mxu0 0.0
  %1767 = vmatpush2.msra.mxu0 0.0
  %1768 = vmatprep.subr.mxu0 0.0
  %1769 = vmatpush2.msra.mxu0 0.0
  %1770 = vmatprep.subr.mxu0 0.0
  %1771 = vmatpush2.msra.mxu0 0.0
  %1772 = vmatprep.subr.mxu0 0.0
  %1773 = vmatpush2.msra.mxu0 0.0
  %1774 = vmatprep.subr.mxu0 0.0
  %1775 = vmatpush2.msra.mxu0 0.0
  %1776 = vmatprep.subr.mxu0 0.0
  %1777 = vmatpush2.msra.mxu0 0.0
  %1778 = vmatprep.mubr.f32.mxu0 0.0
  %1779 = vmatmul.mubr.f32.gmra.mxu0 %v1547
  %v1780 = vpop.f32.mrf.mxu0
  %v1781 = vadd.f32 0.0, %v1780
  %v1782 = vpop.f32.mrf.mxu0
  %1783 = vmatprep.mubr.f32.mxu0 0.0
  %1784 = vmatmul.mubr.f32.gmra.mxu0 %v1550
  %v1785 = vpop.f32.mrf.mxu0
  %v1786 = vadd.f32 0.0, %v1785
  %v1787 = vpop.f32.mrf.mxu0
  %1788 = vdwg.mxu0
  %v1789 = vmul.f32 %v1540, %v1781
  %v1790 = vmul.f32 %v1541, %v1786
  %v1791 = vadd.f32 %v1710, %v1789
  %v1792 = vadd.f32 %v1711, %v1790
  %v1793 = vmul.f32 %v1791, 0.25
  %v1794 = vmul.f32 %v1792, 0.25
  %1795 = vst.msk [vmem:[%s4] sm:$0xff] %vm241, %v1793
  %1796 = vst.msk [vmem:[%s4 + $0x8] sm:$0xff] %vm241, %v1794
  // Predicated region
  $region18: #{sgsl_forward.1} parent=0 // pred_check
    _
  $region19: #{sgsl_forward.1} parent=0 // pred_check_branch
    %1798 = sbr.rel (0) target = $region21
  $region20: #{sgsl_forward.1} parent=0 // pred_region
    _
  $region21: #{sgsl_forward.1} parent=0 // pred_fallthru
    _
  // Predicated region
  $region22: #{sgsl_forward.1} parent=0 // pred_check
    _
  $region23: #{sgsl_forward.1} parent=0 // pred_check_branch
    %1800 = sbr.rel (0) target = $region25
  $region24: #{sgsl_forward.1} parent=0 // pred_region
    _
  $region25: #{sgsl_forward.1} parent=0 // pred_fallthru
    _

</llo_original>
